<compile_context>
chip_gen: v7x
topology: tpu7x:2x2x1
jax: 0.10.0
libtpu: 0.0.40
codegen_flags: <defaults>
</compile_context>

<pallas_src>
import functools
import math

import jax
import jax.numpy as jnp
from jax import lax
from jax.experimental import pallas as pl
from jax.experimental.pallas import tpu as pltpu


# Scoped-VMEM budget used both for the compiler limit and the tile picker.
# Safe on v5e/v6e (128 MiB physical) and v7x (64 MiB physical), above the
# 16/32 MiB scoped defaults so the fused kernel keeps a large TQ.
_VMEM_LIMIT_BYTES = 40 * 1024 * 1024


# ----------------------------------------------------------------------------
# Shared math helper (used both inside the kernel and in the pure-JAX reference)
# ----------------------------------------------------------------------------
def _layernorm(y, gamma, beta, eps=1e-5):
    """nn.LayerNorm over the last axis (biased variance, eps=1e-5), in f32."""
    mean = jnp.mean(y, axis=-1, keepdims=True)
    var = jnp.mean((y - mean) ** 2, axis=-1, keepdims=True)
    return (y - mean) * lax.rsqrt(var + eps) * gamma + beta


# ----------------------------------------------------------------------------
# Fused TransformerBlock kernel (one (batch, query-tile) grid step per call)
# ----------------------------------------------------------------------------
def _transformer_block_kernel(q_ref, k_ref, v_ref, m_ref,
                              wq_ref, wk_ref, wv_ref, wo_ref, bo_ref,
                              g1_ref, be1_ref,
                              w1_ref, b1_ref, w2_ref, b2_ref,
                              g2_ref, be2_ref,
                              o_ref, *, heads):
    TQ, E = q_ref.shape
    Sk = k_ref.shape[0]
    Dh = E // heads
    scale = jnp.float32(1.0 / math.sqrt(Dh))          # / sqrt(d_k), d_k = head_dim
    mxu = wq_ref.dtype                                # bf16 MXU operand dtype

    xq = q_ref[...]                                   # (TQ, E) bf16; also residual
    xk = k_ref[...]                                   # (Sk, E) bf16
    xv = v_ref[...]                                   # (Sk, E) bf16

    # --- Q/K/V projections: block-diagonal (E, E) weights -> one lane-dense,
    #     full-width MXU pass per projection (f32 accumulate, bf16 result).
    def project(x, w_ref, s):
        y = jnp.dot(x, w_ref[...], preferred_element_type=jnp.float32)
        # Separate heads out of the lane axis (bf16 relayout, half the bytes).
        return jnp.transpose(y.astype(mxu).reshape(s, heads, Dh), (1, 0, 2))

    qh = project(xq, wq_ref, TQ)                      # (heads, TQ, Dh)
    kh = project(xk, wk_ref, Sk)                      # (heads, Sk, Dh)
    vh = project(xv, wv_ref, Sk)                      # (heads, Sk, Dh)

    # --- multi-head scaled-dot-product attention, all heads batched (leading
    #     batch dim -> native Mosaic dot_general).  Scores/softmax stay f32.
    e = jnp.einsum('hqd,hkd->hqk', qh, kh,
                   preferred_element_type=jnp.float32)           # (heads, TQ, Sk)
    # Additive key-padding bias (0 / -1e20) applied BEFORE the /sqrt(d_k)
    # scaling, matching masked_fill(mask == 0, -1e20) in the PyTorch reference.
    e = (e + m_ref[...][None]) * scale
    e = e - jnp.max(e, axis=-1, keepdims=True)
    p = jnp.exp(e)
    # approx=True uses the EUP reciprocal (separate bundle slot); switch to
    # approx=False for tighter PyTorch parity.
    p = p * pl.reciprocal(jnp.sum(p, axis=-1, keepdims=True), approx=True)

    oh = jnp.einsum('hqk,hkd->hqd', p.astype(mxu), vh,
                    preferred_element_type=jnp.float32)          # (heads, TQ, Dh)

    # Concatenate heads -> (TQ, E) (bf16 relayout) and run the output
    # projection as one full-contraction-width (TQ, E) @ (E, E) dot.
    cat = jnp.transpose(oh.astype(mxu), (1, 0, 2)).reshape(TQ, E)
    attn = jnp.dot(cat, wo_ref[...],
                   preferred_element_type=jnp.float32) + bo_ref[...]

    # --- residual + LayerNorm 1 (dropout = identity at inference), f32 math.
    n1 = _layernorm(attn + xq.astype(jnp.float32), g1_ref[...], be1_ref[...])

    # --- feed-forward: Linear -> ReLU -> Linear (bf16 MXU, f32 accumulate).
    h = jnp.dot(n1.astype(mxu), w1_ref[...],
                preferred_element_type=jnp.float32) + b1_ref[...]
    h = jnp.maximum(h, 0.0)
    f = jnp.dot(h.astype(mxu), w2_ref[...],
                preferred_element_type=jnp.float32) + b2_ref[...]

    # --- residual + LayerNorm 2, f32 math.
    o_ref[...] = _layernorm(f + n1, g2_ref[...], be2_ref[...]).astype(o_ref.dtype)


# ----------------------------------------------------------------------------
# VMEM-aware query tile picker
# ----------------------------------------------------------------------------
def _pick_q_tile(sq, sk, emb, hidden, heads, budget_bytes):
    """Largest query tile whose live VMEM footprint fits the scoped budget."""
    if sq <= 128:
        return sq                                   # whole (small) sequence at once

    def vmem_bytes(tq):
        bf16, f32 = 2, 4
        act = 2 * tq * emb * (bf16 + f32)                 # double-buffered q-in + f32 out
        kv = 2 * 2 * sk * emb * bf16                      # double-buffered K and V blocks
        wts = (4 * emb * emb + 2 * emb * hidden) * bf16   # single-buffered weights
        live = (heads * tq * sk * (f32 + bf16)            # scores (f32) + probs (bf16)
                + tq * hidden * (f32 + bf16)              # FFN hidden
                + 4 * tq * emb * f32)                     # attn / n1 / ffn-out temporaries
        return act + kv + wts + live

    for tq in (512, 256, 128, 64, 32, 16):                # multiples of 16 sublanes (bf16)
        if sq % tq == 0 and vmem_bytes(tq) <= budget_bytes:
            return tq
    return 16 if sq % 16 == 0 else (8 if sq % 8 == 0 else sq)


# ----------------------------------------------------------------------------
# Parameter preparation (block-diagonal head weights, bf16 MXU operands)
# ----------------------------------------------------------------------------
def prepare_params(params, mxu_dtype=jnp.bfloat16):
    """Build kernel-ready params: block-diag (E,E) Q/K/V weights in bf16,
    bf16 Wo/W1/W2, f32 biases / LayerNorm parameters."""
    dh = params["wq_t"].shape[0]
    emb = params["wo_t"].shape[0]
    heads = emb // dh
    eye = jnp.eye(heads, dtype=params["wq_t"].dtype)
    bd = lambda w: jnp.kron(eye, w).astype(mxu_dtype)   # shared per-head weight -> block-diag

    return {
        "wq_bd": bd(params["wq_t"]),
        "wk_bd": bd(params["wk_t"]),
        "wv_bd": bd(params["wv_t"]),
        "wo_t": params["wo_t"].astype(mxu_dtype),
        "bo": params["bo"].astype(jnp.float32),
        "ln1_g": params["ln1_g"].astype(jnp.float32),
        "ln1_b": params["ln1_b"].astype(jnp.float32),
        "w1_t": params["w1_t"].astype(mxu_dtype),
        "b1": params["b1"].astype(jnp.float32),
        "w2_t": params["w2_t"].astype(mxu_dtype),
        "b2": params["b2"].astype(jnp.float32),
        "ln2_g": params["ln2_g"].astype(jnp.float32),
        "ln2_b": params["ln2_b"].astype(jnp.float32),
    }


# ----------------------------------------------------------------------------
# pallas_call wrapper
# ----------------------------------------------------------------------------
def transformer_block_forward(kparams, value, key, query, mask, *, heads):
    """Pallas port of TransformerBlock.forward(value, key, query, mask).

    `kparams` comes from prepare_params(...).  `mask` is a PyTorch-style
    key-padding mask of shape (B, 1, 1, Sk): nonzero = keep, zero = masked
    (as in `masked_fill(mask == 0, -1e20)`), or None.
    """
    B, Sq, E = query.shape
    Sk = key.shape[1]
    assert key.shape == (B, Sk, E) and value.shape == (B, Sk, E)
    assert E % heads == 0
    H = kparams["w1_t"].shape[1]
    mxu_dtype = kparams["wo_t"].dtype

    # Additive mask bias (0 / -1e20), only a (B, 1, Sk) row travels to VMEM.
    if mask is None:
        mask_bias = jnp.zeros((B, 1, Sk), jnp.float32)
    else:
        assert mask.shape == (B, 1, 1, Sk), mask.shape
        mask_bias = jnp.where(mask.reshape(B, 1, Sk) == 0,
                              jnp.float32(-1e20), jnp.float32(0.0))

    # bf16 activations for MXU operands / half the activation DMA bytes.
    q_x = query.astype(mxu_dtype)
    k_x = key.astype(mxu_dtype)
    v_x = value.astype(mxu_dtype)

    TQ = _pick_q_tile(Sq, Sk, E, H, heads, int(0.8 * _VMEM_LIMIT_BYTES))
    assert Sq % TQ == 0
    # Batch is the LEADING parallel axis so a megacore split lands on batch
    # (K/V blocks are invariant along the query-tile axis).
    grid = (B, Sq // TQ)

    const = lambda b, i: (0, 0)
    # Grid-invariant operands: single-buffered (constant index map -> nothing
    # to overlap; halves their VMEM residency).
    wspec = lambda shape: pl.BlockSpec(shape, const, pipeline_mode=pl.Buffered(1))

    in_specs = [
        pl.BlockSpec((None, TQ, E), lambda b, i: (b, i, 0)),   # query tile (also residual)
        pl.BlockSpec((None, Sk, E), lambda b, i: (b, 0, 0)),   # keys (full length)
        pl.BlockSpec((None, Sk, E), lambda b, i: (b, 0, 0)),   # values (full length)
        pl.BlockSpec((None, 1, Sk), lambda b, i: (b, 0, 0)),   # additive mask bias row
        wspec((E, E)),                                         # Wq block-diag
        wspec((E, E)),                                         # Wk block-diag
        wspec((E, E)),                                         # Wv block-diag
        wspec((E, E)),                                         # Wo^T
        wspec((1, E)),                                         # bo
        wspec((1, E)),                                         # LN1 gamma
        wspec((1, E)),                                         # LN1 beta
        wspec((E, H)),                                         # W1^T
        wspec((1, H)),                                         # b1
        wspec((H, E)),                                         # W2^T
        wspec((1, E)),                                         # b2
        wspec((1, E)),                                         # LN2 gamma
        wspec((1, E)),                                         # LN2 beta
    ]

    kernel = functools.partial(_transformer_block_kernel, heads=heads)

    return pl.pallas_call(
        kernel,
        out_shape=jax.ShapeDtypeStruct((B, Sq, E), query.dtype),
        grid=grid,
        in_specs=in_specs,
        out_specs=pl.BlockSpec((None, TQ, E), lambda b, i: (b, i, 0)),
        compiler_params=pltpu.CompilerParams(
            dimension_semantics=("parallel", "parallel"),
            vmem_limit_bytes=_VMEM_LIMIT_BYTES),
    )(q_x, k_x, v_x, mask_bias,
      kparams["wq_bd"], kparams["wk_bd"], kparams["wv_bd"],
      kparams["wo_t"], kparams["bo"],
      kparams["ln1_g"], kparams["ln1_b"],
      kparams["w1_t"], kparams["b1"], kparams["w2_t"], kparams["b2"],
      kparams["ln2_g"], kparams["ln2_b"])


# ----------------------------------------------------------------------------
# Pure-JAX f32 reference (for in-script correctness check)
# ----------------------------------------------------------------------------
def transformer_block_ref(params, value, key, query, mask):
    """Mirrors the PyTorch module in plain JAX (f32).

    NOTE: the PyTorch source writes `einsum('bhqk,bvhd->bqhd')`; with distinct
    letters k/v that expression degenerates (sums keys and values
    independently) — a well-known tutorial typo.  The intended, standard
    contraction over key/value positions ('bhqk,bkhd->bqhd') is implemented
    here and in the kernel.
    """
    B, Sq, E = query.shape
    Dh = params["wq_t"].shape[0]
    heads = E // Dh
    q = query.reshape(B, Sq, heads, Dh) @ params["wq_t"]
    k = key.reshape(B, -1, heads, Dh) @ params["wk_t"]
    v = value.reshape(B, -1, heads, Dh) @ params["wv_t"]
    e = jnp.einsum('bqhd,bkhd->bhqk', q, k)
    if mask is not None:
        e = jnp.where(mask == 0, -1e20, e)
    a = jax.nn.softmax(e / math.sqrt(Dh), axis=-1)
    o = jnp.einsum('bhqk,bkhd->bqhd', a, v).reshape(B, Sq, E)
    attn = o @ params["wo_t"] + params["bo"]
    n1 = _layernorm(attn + query, params["ln1_g"], params["ln1_b"])
    h = jnp.maximum(n1 @ params["w1_t"] + params["b1"], 0.0)
    f = h @ params["w2_t"] + params["b2"]
    return _layernorm(f + n1, params["ln2_g"], params["ln2_b"])


# ----------------------------------------------------------------------------
# Synthetic parameters (weights stored pre-transposed so x @ W_t == x @ W.T)
# ----------------------------------------------------------------------------
def init_params(key, emb_size, heads, forward_expansion, dtype=jnp.float32):
    dh = emb_size // heads
    hidden = forward_expansion * emb_size
    ks = jax.random.split(key, 6)

    def lin(k, shape, fan_in):
        bound = 1.0 / math.sqrt(fan_in)
        return jax.random.uniform(k, shape, dtype, -bound, bound)

    return {
        "wq_t": lin(ks[0], (dh, dh), dh),
        "wk_t": lin(ks[1], (dh, dh), dh),
        "wv_t": lin(ks[2], (dh, dh), dh),
        "wo_t": lin(ks[3], (emb_size, emb_size), emb_size),
        "bo":   jnp.zeros((1, emb_size), dtype),
        "ln1_g": jnp.ones((1, emb_size), dtype),
        "ln1_b": jnp.zeros((1, emb_size), dtype),
        "w1_t": lin(ks[4], (emb_size, hidden), emb_size),
        "b1":   jnp.zeros((1, hidden), dtype),
        "w2_t": lin(ks[5], (hidden, emb_size), hidden),
        "b2":   jnp.zeros((1, emb_size), dtype),
        "ln2_g": jnp.ones((1, emb_size), dtype),
        "ln2_b": jnp.zeros((1, emb_size), dtype),
    }


# ----------------------------------------------------------------------------
if __name__ == "__main__":
    B, S, E, HEADS, FEXP = 2, 8, 128, 4, 4   # E=128 -> lane-dense blocks

    root = jax.random.PRNGKey(0)
    k_p, k_v, k_k, k_q = jax.random.split(root, 4)

    params = init_params(k_p, E, HEADS, FEXP)
    value = jax.random.normal(k_v, (B, S, E), jnp.float32)
    key_in = jax.random.normal(k_k, (B, S, E), jnp.float32)
    query = jax.random.normal(k_q, (B, S, E), jnp.float32)
    # PyTorch-style key-padding mask (B, 1, 1, Sk): mask out the last two keys
    # of the second batch element.
    mask = jnp.ones((B, 1, 1, S), jnp.float32).at[1, :, :, S - 2:].set(0.0)

    kparams = prepare_params(params)                     # block-diag + bf16, done once
    fwd = jax.jit(transformer_block_forward, static_argnames=("heads",))
    out = fwd(kparams, value, key_in, query, mask, heads=HEADS)
    jax.block_until_ready(out)
    assert out.shape == (B, S, E), out.shape

    ref = transformer_block_ref(params, value, key_in, query, mask)
    rel_err = float(jnp.max(jnp.abs(out - ref)) / (jnp.max(jnp.abs(ref)) + 1e-6))
    # 5e-2 tolerance accounts for bf16 MXU operands (f32 accumulation) vs the
    # f32 reference and the approximate EUP reciprocal in the softmax.
    assert rel_err < 5e-2, f"kernel/reference mismatch: rel_err={rel_err}"
    print("KERNEL_OK")
</pallas_src>

<mosaic_0001>
module attributes {stable_mosaic.version = 11 : i64} {
  func.func @_transformer_block_kernel(%arg0: i32, %arg1: i32, %arg2: memref<1x8x128xbf16, #tpu.memory_space<vmem>>, %arg3: memref<1x8x128xbf16, #tpu.memory_space<vmem>>, %arg4: memref<1x8x128xbf16, #tpu.memory_space<vmem>>, %arg5: memref<1x1x8xf32, #tpu.memory_space<vmem>>, %arg6: memref<128x128xbf16, #tpu.memory_space<vmem>>, %arg7: memref<128x128xbf16, #tpu.memory_space<vmem>>, %arg8: memref<128x128xbf16, #tpu.memory_space<vmem>>, %arg9: memref<128x128xbf16, #tpu.memory_space<vmem>>, %arg10: memref<1x128xf32, #tpu.memory_space<vmem>>, %arg11: memref<1x128xf32, #tpu.memory_space<vmem>>, %arg12: memref<1x128xf32, #tpu.memory_space<vmem>>, %arg13: memref<128x512xbf16, #tpu.memory_space<vmem>>, %arg14: memref<1x512xf32, #tpu.memory_space<vmem>>, %arg15: memref<512x128xbf16, #tpu.memory_space<vmem>>, %arg16: memref<1x128xf32, #tpu.memory_space<vmem>>, %arg17: memref<1x128xf32, #tpu.memory_space<vmem>>, %arg18: memref<1x128xf32, #tpu.memory_space<vmem>>, %arg19: memref<1x8x128xf32, #tpu.memory_space<vmem>>) attributes {dimension_semantics = [#tpu.dimension_semantics<parallel>, #tpu.dimension_semantics<parallel>], iteration_bounds = array<i64: 2, 1>, scalar_prefetch = 0 : i64, scratch_operands = 0 : i64, tpu.core_type = #tpu.core_type<tc>, window_params = [{transform_indices = @transform_0, window_bounds = array<i64: 1, 8, 128>}, {transform_indices = @transform_1, window_bounds = array<i64: 1, 8, 128>}, {transform_indices = @transform_2, window_bounds = array<i64: 1, 8, 128>}, {transform_indices = @transform_3, window_bounds = array<i64: 1, 1, 8>}, {pipeline_mode = #tpu.pipeline_mode<synchronous>, transform_indices = @transform_4, window_bounds = array<i64: 128, 128>}, {pipeline_mode = #tpu.pipeline_mode<synchronous>, transform_indices = @transform_5, window_bounds = array<i64: 128, 128>}, {pipeline_mode = #tpu.pipeline_mode<synchronous>, transform_indices = @transform_6, window_bounds = array<i64: 128, 128>}, {pipeline_mode = #tpu.pipeline_mode<synchronous>, transform_indices = @transform_7, window_bounds = array<i64: 128, 128>}, {pipeline_mode = #tpu.pipeline_mode<synchronous>, transform_indices = @transform_8, window_bounds = array<i64: 1, 128>}, {pipeline_mode = #tpu.pipeline_mode<synchronous>, transform_indices = @transform_9, window_bounds = array<i64: 1, 128>}, {pipeline_mode = #tpu.pipeline_mode<synchronous>, transform_indices = @transform_10, window_bounds = array<i64: 1, 128>}, {pipeline_mode = #tpu.pipeline_mode<synchronous>, transform_indices = @transform_11, window_bounds = array<i64: 128, 512>}, {pipeline_mode = #tpu.pipeline_mode<synchronous>, transform_indices = @transform_12, window_bounds = array<i64: 1, 512>}, {pipeline_mode = #tpu.pipeline_mode<synchronous>, transform_indices = @transform_13, window_bounds = array<i64: 512, 128>}, {pipeline_mode = #tpu.pipeline_mode<synchronous>, transform_indices = @transform_14, window_bounds = array<i64: 1, 128>}, {pipeline_mode = #tpu.pipeline_mode<synchronous>, transform_indices = @transform_15, window_bounds = array<i64: 1, 128>}, {pipeline_mode = #tpu.pipeline_mode<synchronous>, transform_indices = @transform_16, window_bounds = array<i64: 1, 128>}, {transform_indices = @transform_17, window_bounds = array<i64: 1, 8, 128>}]} {
    %c0 = arith.constant 0 : index
    %c0_0 = arith.constant 0 : index
    %c0_1 = arith.constant 0 : index
    %0 = vector.load %arg2[%c0, %c0_0, %c0_1] : memref<1x8x128xbf16, #tpu.memory_space<vmem>>, vector<1x8x128xbf16>
    %1 = vector.shape_cast %0 : vector<1x8x128xbf16> to vector<8x128xbf16>
    %c0_2 = arith.constant 0 : index
    %c0_3 = arith.constant 0 : index
    %c0_4 = arith.constant 0 : index
    %2 = vector.load %arg3[%c0_2, %c0_3, %c0_4] : memref<1x8x128xbf16, #tpu.memory_space<vmem>>, vector<1x8x128xbf16>
    %3 = vector.shape_cast %2 : vector<1x8x128xbf16> to vector<8x128xbf16>
    %c0_5 = arith.constant 0 : index
    %c0_6 = arith.constant 0 : index
    %c0_7 = arith.constant 0 : index
    %4 = vector.load %arg4[%c0_5, %c0_6, %c0_7] : memref<1x8x128xbf16, #tpu.memory_space<vmem>>, vector<1x8x128xbf16>
    %5 = vector.shape_cast %4 : vector<1x8x128xbf16> to vector<8x128xbf16>
    %c0_8 = arith.constant 0 : index
    %c0_9 = arith.constant 0 : index
    %6 = vector.load %arg6[%c0_8, %c0_9] : memref<128x128xbf16, #tpu.memory_space<vmem>>, vector<128x128xbf16>
    %cst = arith.constant dense<0.000000e+00> : vector<8x128xf32>
    %7 = tpu.matmul %1, %6, %cst {dimension_numbers = #tpu.dot_dimension_numbers<[1], [0], [0], [1], [0, 0, 1, 1], [], []>} : vector<8x128xbf16>, vector<128x128xbf16>, vector<8x128xf32> -> vector<8x128xf32>
    %8 = arith.truncf %7 : vector<8x128xf32> to vector<8x128xbf16>
    %9 = vector.shape_cast %8 : vector<8x128xbf16> to vector<8x4x32xbf16>
    %10 = tpu.transpose %9, [1, 0, 2] : vector<8x4x32xbf16> -> vector<4x8x32xbf16>
    %c0_10 = arith.constant 0 : index
    %c0_11 = arith.constant 0 : index
    %11 = vector.load %arg7[%c0_10, %c0_11] : memref<128x128xbf16, #tpu.memory_space<vmem>>, vector<128x128xbf16>
    %cst_12 = arith.constant dense<0.000000e+00> : vector<8x128xf32>
    %12 = tpu.matmul %3, %11, %cst_12 {dimension_numbers = #tpu.dot_dimension_numbers<[1], [0], [0], [1], [0, 0, 1, 1], [], []>} : vector<8x128xbf16>, vector<128x128xbf16>, vector<8x128xf32> -> vector<8x128xf32>
    %13 = arith.truncf %12 : vector<8x128xf32> to vector<8x128xbf16>
    %14 = vector.shape_cast %13 : vector<8x128xbf16> to vector<8x4x32xbf16>
    %15 = tpu.transpose %14, [1, 0, 2] : vector<8x4x32xbf16> -> vector<4x8x32xbf16>
    %c0_13 = arith.constant 0 : index
    %c0_14 = arith.constant 0 : index
    %16 = vector.load %arg8[%c0_13, %c0_14] : memref<128x128xbf16, #tpu.memory_space<vmem>>, vector<128x128xbf16>
    %cst_15 = arith.constant dense<0.000000e+00> : vector<8x128xf32>
    %17 = tpu.matmul %5, %16, %cst_15 {dimension_numbers = #tpu.dot_dimension_numbers<[1], [0], [0], [1], [0, 0, 1, 1], [], []>} : vector<8x128xbf16>, vector<128x128xbf16>, vector<8x128xf32> -> vector<8x128xf32>
    %18 = arith.truncf %17 : vector<8x128xf32> to vector<8x128xbf16>
    %19 = vector.shape_cast %18 : vector<8x128xbf16> to vector<8x4x32xbf16>
    %20 = tpu.transpose %19, [1, 0, 2] : vector<8x4x32xbf16> -> vector<4x8x32xbf16>
    "tpu.trace_start"() <{level = 10 : i32, message = "hqd,hkd->hqk"}> : () -> ()
    %cst_16 = arith.constant dense<0.000000e+00> : vector<4x8x8xf32>
    %21 = tpu.matmul %10, %15, %cst_16 {dimension_numbers = #tpu.dot_dimension_numbers<[2], [2], [1], [1], [0, 0, 0, 1, 1, 1], [0], [0]>} : vector<4x8x32xbf16>, vector<4x8x32xbf16>, vector<4x8x8xf32> -> vector<4x8x8xf32>
    "tpu.trace_stop"() : () -> ()
    %c0_17 = arith.constant 0 : index
    %c0_18 = arith.constant 0 : index
    %c0_19 = arith.constant 0 : index
    %22 = vector.load %arg5[%c0_17, %c0_18, %c0_19] : memref<1x1x8xf32, #tpu.memory_space<vmem>>, vector<1x1x8xf32>
    %23 = vector.shape_cast %22 : vector<1x1x8xf32> to vector<1x8xf32>
    %24 = vector.shape_cast %23 : vector<1x8xf32> to vector<1x1x8xf32>
    %25 = vector.broadcast %24 : vector<1x1x8xf32> to vector<4x8x8xf32>
    %26 = arith.addf %21, %25 : vector<4x8x8xf32>
    %cst_20 = arith.constant 0.176776692 : f32
    %27 = vector.broadcast %cst_20 : f32 to vector<4x8x8xf32>
    %28 = arith.mulf %26, %27 : vector<4x8x8xf32>
    %cst_21 = arith.constant dense<0xFF800000> : vector<4x8xf32>
    %29 = vector.multi_reduction <maximumf>, %28, %cst_21 [2] : vector<4x8x8xf32> to vector<4x8xf32>
    %30 = vector.shape_cast %29 : vector<4x8xf32> to vector<4x8x1xf32>
    %31 = vector.broadcast %30 : vector<4x8x1xf32> to vector<4x8x8xf32>
    %32 = arith.subf %28, %31 : vector<4x8x8xf32>
    %33 = math.exp %32 : vector<4x8x8xf32>
    %cst_22 = arith.constant dense<0.000000e+00> : vector<4x8xf32>
    %34 = vector.multi_reduction <add>, %33, %cst_22 [2] : vector<4x8x8xf32> to vector<4x8xf32>
    %35 = vector.shape_cast %34 : vector<4x8xf32> to vector<4x8x1xf32>
    %36 = tpu.reciprocal %35 {approx = true} : vector<4x8x1xf32> -> vector<4x8x1xf32>
    %37 = vector.broadcast %36 : vector<4x8x1xf32> to vector<4x8x8xf32>
    %38 = arith.mulf %33, %37 : vector<4x8x8xf32>
    %39 = arith.truncf %38 : vector<4x8x8xf32> to vector<4x8x8xbf16>
    "tpu.trace_start"() <{level = 10 : i32, message = "hqk,hkd->hqd"}> : () -> ()
    %cst_23 = arith.constant dense<0.000000e+00> : vector<4x8x32xf32>
    %40 = tpu.matmul %39, %20, %cst_23 {dimension_numbers = #tpu.dot_dimension_numbers<[2], [1], [1], [2], [0, 0, 0, 1, 1, 2], [0], [0]>} : vector<4x8x8xbf16>, vector<4x8x32xbf16>, vector<4x8x32xf32> -> vector<4x8x32xf32>
    "tpu.trace_stop"() : () -> ()
    %41 = arith.truncf %40 : vector<4x8x32xf32> to vector<4x8x32xbf16>
    %42 = tpu.transpose %41, [1, 0, 2] : vector<4x8x32xbf16> -> vector<8x4x32xbf16>
    %43 = vector.shape_cast %42 : vector<8x4x32xbf16> to vector<8x128xbf16>
    %c0_24 = arith.constant 0 : index
    %c0_25 = arith.constant 0 : index
    %44 = vector.load %arg9[%c0_24, %c0_25] : memref<128x128xbf16, #tpu.memory_space<vmem>>, vector<128x128xbf16>
    %cst_26 = arith.constant dense<0.000000e+00> : vector<8x128xf32>
    %45 = tpu.matmul %43, %44, %cst_26 {dimension_numbers = #tpu.dot_dimension_numbers<[1], [0], [0], [1], [0, 0, 1, 1], [], []>} : vector<8x128xbf16>, vector<128x128xbf16>, vector<8x128xf32> -> vector<8x128xf32>
    %c0_27 = arith.constant 0 : index
    %c0_28 = arith.constant 0 : index
    %46 = vector.load %arg10[%c0_27, %c0_28] : memref<1x128xf32, #tpu.memory_space<vmem>>, vector<1x128xf32>
    %47 = vector.broadcast %46 : vector<1x128xf32> to vector<8x128xf32>
    %48 = arith.addf %45, %47 : vector<8x128xf32>
    %49 = arith.extf %1 : vector<8x128xbf16> to vector<8x128xf32>
    %50 = arith.addf %48, %49 : vector<8x128xf32>
    %c0_29 = arith.constant 0 : index
    %c0_30 = arith.constant 0 : index
    %51 = vector.load %arg11[%c0_29, %c0_30] : memref<1x128xf32, #tpu.memory_space<vmem>>, vector<1x128xf32>
    %c0_31 = arith.constant 0 : index
    %c0_32 = arith.constant 0 : index
    %52 = vector.load %arg12[%c0_31, %c0_32] : memref<1x128xf32, #tpu.memory_space<vmem>>, vector<1x128xf32>
    %cst_33 = arith.constant dense<0.000000e+00> : vector<8xf32>
    %53 = vector.multi_reduction <add>, %50, %cst_33 [1] : vector<8x128xf32> to vector<8xf32>
    %54 = vector.shape_cast %53 : vector<8xf32> to vector<8x1xf32>
    %cst_34 = arith.constant 1.280000e+02 : f32
    %55 = vector.broadcast %cst_34 : f32 to vector<8x1xf32>
    %56 = arith.divf %54, %55 : vector<8x1xf32>
    %57 = vector.broadcast %56 : vector<8x1xf32> to vector<8x128xf32>
    %58 = arith.subf %50, %57 : vector<8x128xf32>
    %59 = arith.mulf %58, %58 : vector<8x128xf32>
    %cst_35 = arith.constant dense<0.000000e+00> : vector<8xf32>
    %60 = vector.multi_reduction <add>, %59, %cst_35 [1] : vector<8x128xf32> to vector<8xf32>
    %61 = vector.shape_cast %60 : vector<8xf32> to vector<8x1xf32>
    %cst_36 = arith.constant 1.280000e+02 : f32
    %62 = vector.broadcast %cst_36 : f32 to vector<8x1xf32>
    %63 = arith.divf %61, %62 : vector<8x1xf32>
    %64 = vector.broadcast %56 : vector<8x1xf32> to vector<8x128xf32>
    %65 = arith.subf %50, %64 : vector<8x128xf32>
    %cst_37 = arith.constant 9.99999974E-6 : f32
    %66 = vector.broadcast %cst_37 : f32 to vector<8x1xf32>
    %67 = arith.addf %63, %66 : vector<8x1xf32>
    %68 = math.rsqrt %67 : vector<8x1xf32>
    %69 = vector.broadcast %68 : vector<8x1xf32> to vector<8x128xf32>
    %70 = arith.mulf %65, %69 : vector<8x128xf32>
    %71 = vector.broadcast %51 : vector<1x128xf32> to vector<8x128xf32>
    %72 = arith.mulf %70, %71 : vector<8x128xf32>
    %73 = vector.broadcast %52 : vector<1x128xf32> to vector<8x128xf32>
    %74 = arith.addf %72, %73 : vector<8x128xf32>
    %75 = arith.truncf %74 : vector<8x128xf32> to vector<8x128xbf16>
    %c0_38 = arith.constant 0 : index
    %c0_39 = arith.constant 0 : index
    %76 = vector.load %arg13[%c0_38, %c0_39] : memref<128x512xbf16, #tpu.memory_space<vmem>>, vector<128x512xbf16>
    %cst_40 = arith.constant dense<0.000000e+00> : vector<8x512xf32>
    %77 = tpu.matmul %75, %76, %cst_40 {dimension_numbers = #tpu.dot_dimension_numbers<[1], [0], [0], [1], [0, 0, 1, 1], [], []>} : vector<8x128xbf16>, vector<128x512xbf16>, vector<8x512xf32> -> vector<8x512xf32>
    %c0_41 = arith.constant 0 : index
    %c0_42 = arith.constant 0 : index
    %78 = vector.load %arg14[%c0_41, %c0_42] : memref<1x512xf32, #tpu.memory_space<vmem>>, vector<1x512xf32>
    %79 = vector.broadcast %78 : vector<1x512xf32> to vector<8x512xf32>
    %80 = arith.addf %77, %79 : vector<8x512xf32>
    %cst_43 = arith.constant 0.000000e+00 : f32
    %81 = vector.broadcast %cst_43 : f32 to vector<8x512xf32>
    %82 = arith.maximumf %80, %81 : vector<8x512xf32>
    %83 = arith.truncf %82 : vector<8x512xf32> to vector<8x512xbf16>
    %c0_44 = arith.constant 0 : index
    %c0_45 = arith.constant 0 : index
    %84 = vector.load %arg15[%c0_44, %c0_45] : memref<512x128xbf16, #tpu.memory_space<vmem>>, vector<512x128xbf16>
    %cst_46 = arith.constant dense<0.000000e+00> : vector<8x128xf32>
    %85 = tpu.matmul %83, %84, %cst_46 {dimension_numbers = #tpu.dot_dimension_numbers<[1], [0], [0], [1], [0, 0, 1, 1], [], []>} : vector<8x512xbf16>, vector<512x128xbf16>, vector<8x128xf32> -> vector<8x128xf32>
    %c0_47 = arith.constant 0 : index
    %c0_48 = arith.constant 0 : index
    %86 = vector.load %arg16[%c0_47, %c0_48] : memref<1x128xf32, #tpu.memory_space<vmem>>, vector<1x128xf32>
    %87 = vector.broadcast %86 : vector<1x128xf32> to vector<8x128xf32>
    %88 = arith.addf %85, %87 : vector<8x128xf32>
    %89 = arith.addf %88, %74 : vector<8x128xf32>
    %c0_49 = arith.constant 0 : index
    %c0_50 = arith.constant 0 : index
    %90 = vector.load %arg17[%c0_49, %c0_50] : memref<1x128xf32, #tpu.memory_space<vmem>>, vector<1x128xf32>
    %c0_51 = arith.constant 0 : index
    %c0_52 = arith.constant 0 : index
    %91 = vector.load %arg18[%c0_51, %c0_52] : memref<1x128xf32, #tpu.memory_space<vmem>>, vector<1x128xf32>
    %cst_53 = arith.constant dense<0.000000e+00> : vector<8xf32>
    %92 = vector.multi_reduction <add>, %89, %cst_53 [1] : vector<8x128xf32> to vector<8xf32>
    %93 = vector.shape_cast %92 : vector<8xf32> to vector<8x1xf32>
    %cst_54 = arith.constant 1.280000e+02 : f32
    %94 = vector.broadcast %cst_54 : f32 to vector<8x1xf32>
    %95 = arith.divf %93, %94 : vector<8x1xf32>
    %96 = vector.broadcast %95 : vector<8x1xf32> to vector<8x128xf32>
    %97 = arith.subf %89, %96 : vector<8x128xf32>
    %98 = arith.mulf %97, %97 : vector<8x128xf32>
    %cst_55 = arith.constant dense<0.000000e+00> : vector<8xf32>
    %99 = vector.multi_reduction <add>, %98, %cst_55 [1] : vector<8x128xf32> to vector<8xf32>
    %100 = vector.shape_cast %99 : vector<8xf32> to vector<8x1xf32>
    %cst_56 = arith.constant 1.280000e+02 : f32
    %101 = vector.broadcast %cst_56 : f32 to vector<8x1xf32>
    %102 = arith.divf %100, %101 : vector<8x1xf32>
    %103 = vector.broadcast %95 : vector<8x1xf32> to vector<8x128xf32>
    %104 = arith.subf %89, %103 : vector<8x128xf32>
    %cst_57 = arith.constant 9.99999974E-6 : f32
    %105 = vector.broadcast %cst_57 : f32 to vector<8x1xf32>
    %106 = arith.addf %102, %105 : vector<8x1xf32>
    %107 = math.rsqrt %106 : vector<8x1xf32>
    %108 = vector.broadcast %107 : vector<8x1xf32> to vector<8x128xf32>
    %109 = arith.mulf %104, %108 : vector<8x128xf32>
    %110 = vector.broadcast %90 : vector<1x128xf32> to vector<8x128xf32>
    %111 = arith.mulf %109, %110 : vector<8x128xf32>
    %112 = vector.broadcast %91 : vector<1x128xf32> to vector<8x128xf32>
    %113 = arith.addf %111, %112 : vector<8x128xf32>
    %c0_58 = arith.constant 0 : index
    %c0_59 = arith.constant 0 : index
    %c0_60 = arith.constant 0 : index
    %114 = vector.load %arg19[%c0_58, %c0_59, %c0_60] : memref<1x8x128xf32, #tpu.memory_space<vmem>>, vector<1x8x128xf32>
    %115 = vector.shape_cast %114 : vector<1x8x128xf32> to vector<8x128xf32>
    %116 = vector.shape_cast %113 : vector<8x128xf32> to vector<1x8x128xf32>
    tpu.vector_store %arg19[%c0_58, %c0_59, %c0_60], %116 {strides = array<i32>} : memref<1x8x128xf32, #tpu.memory_space<vmem>>, vector<1x8x128xf32>,
    return
  }
  func.func @transform_0(%arg0: i32, %arg1: i32) -> (i32, i32, i32) {
    %c0_i32 = arith.constant 0 : i32
    %c0_i32_0 = arith.constant 0 : i32
    return %arg0, %arg1, %c0_i32 : i32, i32, i32
  }
  func.func @transform_1(%arg0: i32, %arg1: i32) -> (i32, i32, i32) {
    %c0_i32 = arith.constant 0 : i32
    %c0_i32_0 = arith.constant 0 : i32
    %c0_i32_1 = arith.constant 0 : i32
    return %arg0, %c0_i32, %c0_i32_0 : i32, i32, i32
  }
  func.func @transform_2(%arg0: i32, %arg1: i32) -> (i32, i32, i32) {
    %c0_i32 = arith.constant 0 : i32
    %c0_i32_0 = arith.constant 0 : i32
    %c0_i32_1 = arith.constant 0 : i32
    return %arg0, %c0_i32, %c0_i32_0 : i32, i32, i32
  }
  func.func @transform_3(%arg0: i32, %arg1: i32) -> (i32, i32, i32) {
    %c0_i32 = arith.constant 0 : i32
    %c0_i32_0 = arith.constant 0 : i32
    %c0_i32_1 = arith.constant 0 : i32
    return %arg0, %c0_i32, %c0_i32_0 : i32, i32, i32
  }
  func.func @transform_4(%arg0: i32, %arg1: i32) -> (i32, i32) {
    %c0_i32 = arith.constant 0 : i32
    %c0_i32_0 = arith.constant 0 : i32
    %c0_i32_1 = arith.constant 0 : i32
    return %c0_i32, %c0_i32_0 : i32, i32
  }
  func.func @transform_5(%arg0: i32, %arg1: i32) -> (i32, i32) {
    %c0_i32 = arith.constant 0 : i32
    %c0_i32_0 = arith.constant 0 : i32
    %c0_i32_1 = arith.constant 0 : i32
    return %c0_i32, %c0_i32_0 : i32, i32
  }
  func.func @transform_6(%arg0: i32, %arg1: i32) -> (i32, i32) {
    %c0_i32 = arith.constant 0 : i32
    %c0_i32_0 = arith.constant 0 : i32
    %c0_i32_1 = arith.constant 0 : i32
    return %c0_i32, %c0_i32_0 : i32, i32
  }
  func.func @transform_7(%arg0: i32, %arg1: i32) -> (i32, i32) {
    %c0_i32 = arith.constant 0 : i32
    %c0_i32_0 = arith.constant 0 : i32
    %c0_i32_1 = arith.constant 0 : i32
    return %c0_i32, %c0_i32_0 : i32, i32
  }
  func.func @transform_8(%arg0: i32, %arg1: i32) -> (i32, i32) {
    %c0_i32 = arith.constant 0 : i32
    %c0_i32_0 = arith.constant 0 : i32
    %c0_i32_1 = arith.constant 0 : i32
    return %c0_i32, %c0_i32_0 : i32, i32
  }
  func.func @transform_9(%arg0: i32, %arg1: i32) -> (i32, i32) {
    %c0_i32 = arith.constant 0 : i32
    %c0_i32_0 = arith.constant 0 : i32
    %c0_i32_1 = arith.constant 0 : i32
    return %c0_i32, %c0_i32_0 : i32, i32
  }
  func.func @transform_10(%arg0: i32, %arg1: i32) -> (i32, i32) {
    %c0_i32 = arith.constant 0 : i32
    %c0_i32_0 = arith.constant 0 : i32
    %c0_i32_1 = arith.constant 0 : i32
    return %c0_i32, %c0_i32_0 : i32, i32
  }
  func.func @transform_11(%arg0: i32, %arg1: i32) -> (i32, i32) {
    %c0_i32 = arith.constant 0 : i32
    %c0_i32_0 = arith.constant 0 : i32
    %c0_i32_1 = arith.constant 0 : i32
    return %c0_i32, %c0_i32_0 : i32, i32
  }
  func.func @transform_12(%arg0: i32, %arg1: i32) -> (i32, i32) {
    %c0_i32 = arith.constant 0 : i32
    %c0_i32_0 = arith.constant 0 : i32
    %c0_i32_1 = arith.constant 0 : i32
    return %c0_i32, %c0_i32_0 : i32, i32
  }
  func.func @transform_13(%arg0: i32, %arg1: i32) -> (i32, i32) {
    %c0_i32 = arith.constant 0 : i32
    %c0_i32_0 = arith.constant 0 : i32
    %c0_i32_1 = arith.constant 0 : i32
    return %c0_i32, %c0_i32_0 : i32, i32
  }
  func.func @transform_14(%arg0: i32, %arg1: i32) -> (i32, i32) {
    %c0_i32 = arith.constant 0 : i32
    %c0_i32_0 = arith.constant 0 : i32
    %c0_i32_1 = arith.constant 0 : i32
    return %c0_i32, %c0_i32_0 : i32, i32
  }
  func.func @transform_15(%arg0: i32, %arg1: i32) -> (i32, i32) {
    %c0_i32 = arith.constant 0 : i32
    %c0_i32_0 = arith.constant 0 : i32
    %c0_i32_1 = arith.constant 0 : i32
    return %c0_i32, %c0_i32_0 : i32, i32
  }
  func.func @transform_16(%arg0: i32, %arg1: i32) -> (i32, i32) {
    %c0_i32 = arith.constant 0 : i32
    %c0_i32_0 = arith.constant 0 : i32
    %c0_i32_1 = arith.constant 0 : i32
    return %c0_i32, %c0_i32_0 : i32, i32
  }
  func.func @transform_17(%arg0: i32, %arg1: i32) -> (i32, i32, i32) {
    %c0_i32 = arith.constant 0 : i32
    %c0_i32_0 = arith.constant 0 : i32
    return %arg0, %arg1, %c0_i32 : i32, i32, i32
  }
}

</mosaic_0001>

<llo_original>
// kernel: transformer_block_forward.1
$region0: #{transformer_block_forward.1}
  #allocation0 [shape = 'u32[]', space=smem, size = 0x4, offset = 0x4, fixed_abs, tag = 'smem constant byte address 0x4 - core index']
  #allocation1 [shape = 'u32[144,128]{1,0:T(1,128)}', space=vmem, size = 0x12000, scoped, tag = 'internal scratch']
  %s0 = inlined_call_operand.vmem [shape: bf16[2,8,128], index: 0, kind: input, shape index: {}]
  %s1 = inlined_call_operand.vmem [shape: bf16[2,8,128], index: 1, kind: input, shape index: {}]
  %s2 = inlined_call_operand.vmem [shape: bf16[2,8,128], index: 2, kind: input, shape index: {}]
  %s3 = inlined_call_operand.vmem [shape: f32[2,1,8], index: 3, kind: input, shape index: {}]
  %s4 = inlined_call_operand.vmem [shape: bf16[128,128], index: 4, kind: input, shape index: {}]
  %s5 = inlined_call_operand.hbm [shape: bf16[128,128], index: 5, kind: input, shape index: {}]
  %s6 = inlined_call_operand.hbm [shape: bf16[128,128], index: 6, kind: input, shape index: {}]
  %s7 = inlined_call_operand.hbm [shape: bf16[128,128], index: 7, kind: input, shape index: {}]
  %s8 = inlined_call_operand.vmem [shape: f32[1,128], index: 8, kind: input, shape index: {}]
  %s9 = inlined_call_operand.vmem [shape: f32[1,128], index: 9, kind: input, shape index: {}]
  %s10 = inlined_call_operand.vmem [shape: f32[1,128], index: 10, kind: input, shape index: {}]
  %s11 = inlined_call_operand.hbm [shape: bf16[128,512], index: 11, kind: input, shape index: {}]
  %s12 = inlined_call_operand.vmem [shape: f32[1,512], index: 12, kind: input, shape index: {}]
  %s13 = inlined_call_operand.hbm [shape: bf16[512,128], index: 13, kind: input, shape index: {}]
  %s14 = inlined_call_operand.vmem [shape: f32[1,128], index: 14, kind: input, shape index: {}]
  %s15 = inlined_call_operand.vmem [shape: f32[1,128], index: 15, kind: input, shape index: {}]
  %s16 = inlined_call_operand.hbm [shape: f32[1,128], index: 16, kind: input, shape index: {}]
  %s17 = inlined_call_operand.hbm [shape: f32[2,8,128], index: 17, kind: output, shape index: {}]
  %s18 = sld [smem:[#allocation0]]
  $region125: #{transformer_block_forward.1} parent=0
    _
  %s20 = ssub.s32 1, %s18
  %s21 = scalar_select 0, %s20, %s18
  $region1: #{transformer_block_forward.1} parent=0
    #allocation2 [shape = 'u8[32768]{0}', space=vmem, size = 0x8000, scoped, tag = 'input window, operand 5, single buffered']
    #allocation3 [shape = 's32[2]{0}', space=sflag, size = 0x8, scoped, tag = 'scoped memory for transformer_block_forward.1']
    #allocation4 [shape = 's32[2]{0}', space=sflag, size = 0x8, scoped, tag = 'scoped memory for transformer_block_forward.1']
    #allocation5 [shape = 'u8[32768]{0}', space=vmem, size = 0x8000, scoped, tag = 'input window, operand 6, single buffered']
    #allocation6 [shape = 's32[1]{0}', space=sflag, size = 0x4, scoped, tag = 'scoped memory for transformer_block_forward.1']
    #allocation7 [shape = 'u8[32768]{0}', space=vmem, size = 0x8000, scoped, tag = 'input window, operand 7, single buffered']
    #allocation8 [shape = 'u8[131072]{0}', space=vmem, size = 0x20000, scoped, tag = 'input window, operand 11, single buffered']
    #allocation9 [shape = 's32[1]{0}', space=sflag, size = 0x4, scoped, tag = 'scoped memory for transformer_block_forward.1']
    #allocation10 [shape = 'u8[131072]{0}', space=vmem, size = 0x20000, scoped, tag = 'input window, operand 13, single buffered']
    #allocation11 [shape = 'u8[512]{0}', space=vmem, size = 0x400, scoped, tag = 'input window, operand 16, single buffered']
    #allocation12 [shape = 's32[1]{0}', space=sflag, size = 0x4, scoped, tag = 'scoped memory for transformer_block_forward.1']
    #allocation13 [shape = 'u8[8192]{0}', space=vmem, size = 0x2000, scoped, tag = 'output window, operand 0']
    %22 = vsyncpa [#allocation3], 0
    %23 = vsyncpa [#allocation6], 0
    %24 = vsyncpa [#allocation9], 0
    %25 = vsyncpa [#allocation12], 0
    %26 = vsyncpa [#allocation4], 0
    %s27 = scalar_lea.sflag [#allocation4], 1
    %28 = vsyncpa %s27, 0
    loop: start=0, step=1, limit=4
    $region2: #{transformer_block_forward.1} parent=1 // loop_pre_header
      _
    $region3: #{transformer_block_forward.1} parent=1 // loop_header
      %s30 = sphi 0, %s34
      %p31 = scmp.ge.s32.totalorder %s30, 4
      %s37 = sphi 0, %s49
      %s38 = sphi 0, %s45
      %s39 = sphi 0, %s37
      %s40 = sphi 0, %s38
      %s41 = sphi 0, %s39
      %s42 = sphi 0, %s40
      %s54 = sphi 0, %s56
      %s57 = sphi 0, %s54
      %s58 = sphi 0, %s57
      %s74 = sphi 0, %s58
      %s80 = sphi 0, %s82
      %s83 = sphi 0, %s80
      %s84 = sphi 0, %s83
      %s100 = sphi 0, %s84
      %s106 = sphi 0, %s108
      %s109 = sphi 0, %s106
      %s110 = sphi 0, %s109
      %s126 = sphi 0, %s110
      %s132 = sphi 0, %s134
      %s135 = sphi 0, %s132
      %s136 = sphi 0, %s135
      %s152 = sphi 0, %s136
      %s156 = sphi 0, %s156
      %s158 = sphi 0, %s156
      %s159 = sphi 0, %s158
      %s173 = sphi 0, %s159
      %s177 = sphi 0, %s177
      %s179 = sphi 0, %s177
      %s180 = sphi 0, %s179
      %s194 = sphi 0, %s180
      %s198 = sphi 0, %s198
      %s200 = sphi 0, %s198
      %s201 = sphi 0, %s200
      %s215 = sphi 0, %s201
      %s219 = sphi 0, %s219
      %s221 = sphi 0, %s219
      %s222 = sphi 0, %s221
      %s236 = sphi 0, %s222
      %s240 = sphi 0, %s240
      %s242 = sphi 0, %s240
      %s243 = sphi 0, %s242
      %s257 = sphi 0, %s243
      %s261 = sphi 0, %s261
      %s263 = sphi 0, %s261
      %s264 = sphi 0, %s263
      %s278 = sphi 0, %s264
      %s282 = sphi 0, %s282
      %s284 = sphi 0, %s282
      %s285 = sphi 0, %s284
      %s299 = sphi 0, %s285
      %s303 = sphi 0, %s303
      %s305 = sphi 0, %s303
      %s306 = sphi 0, %s305
      %s320 = sphi 0, %s306
      %s324 = sphi 0, %s324
      %s326 = sphi 0, %s324
      %s327 = sphi 0, %s326
      %s341 = sphi 0, %s327
      %s345 = sphi 0, %s345
      %s347 = sphi 0, %s345
      %s348 = sphi 0, %s347
      %s362 = sphi 0, %s348
      %s366 = sphi 0, %s366
      %s368 = sphi 0, %s366
      %s369 = sphi 0, %s368
      %s383 = sphi 0, %s369
      %s387 = sphi 0, %s387
      %s389 = sphi 0, %s387
      %s390 = sphi 0, %s389
      %s404 = sphi 0, %s390
      %s408 = sphi 0, %s408
      %s410 = sphi 0, %s408
      %s411 = sphi 0, %s410
      %s425 = sphi 0, %s411
      %s433 = sphi 0, %s435
      %s436 = sphi 0, %s433
      %s437 = sphi 0, %s436
      %s453 = sphi 0, %s437
    $region4: #{transformer_block_forward.1} parent=1 // loop_header_branch
      %33 = sbr.rel (%p31) target = $region8
    $region5: #{transformer_block_forward.1} parent=1 // loop_body
      %s35 = ssub.s32 %s30, 1
      %s36 = ssub.s32 %s30, 2
      %s43 = sadd.s32 1, %s38
      %p44 = scmp.ge.s32.totalorder %s43, 1
      %s45 = scalar_select %p44, 0, %s43
      %s46 = sadd.s32 1, %s37
      %s47 = scalar_select %p44, %s46, %s37
      %p48 = scmp.ge.s32.totalorder %s47, 2
      %s49 = scalar_select %p48, 0, %s47
      %s50 = ssub.s32 %s37, %s49
      %s51 = ssub.s32 %s38, %s45
      %s52 = sor.u32 %s50, %s51
      %p53 = scmp.eq.s32.totalorder %s52, 0
      %s55 = sadd.s32 %s54, 1
      %s56 = scalar_select %p53, %s54, %s55
      %p59 = pneg %p53
      %p60 = scmp.eq.s32.totalorder %s30, 1
      %p61 = por %p59, %p60
      %p62 = scmp.ne.s32.totalorder %s54, %s57
      %p63 = scmp.eq.s32.totalorder %s30, 0
      %p64 = por %p62, %p63
      %p65 = scmp.ne.s32.totalorder %s54, %s57
      %p66 = scmp.eq.s32.totalorder %s35, 1
      %p67 = por %p65, %p66
      %p68 = scmp.ne.s32.totalorder %s57, %s58
      %p69 = scmp.eq.s32.totalorder %s35, 0
      %p70 = por %p68, %p69
      %p71 = scmp.ne.s32.totalorder %s57, %s58
      %p72 = scmp.eq.s32.totalorder %s36, 1
      %p73 = por %p71, %p72
      %p75 = scmp.ne.s32.totalorder %s58, %s74
      %p76 = scmp.eq.s32.totalorder %s36, 0
      %p77 = por %p75, %p76
      %s78 = ssub.s32 %s37, %s49
      %p79 = scmp.eq.s32.totalorder %s78, 0
      %s81 = sadd.s32 %s80, 1
      %s82 = scalar_select %p79, %s80, %s81
      %p85 = pneg %p79
      %p86 = scmp.eq.s32.totalorder %s30, 1
      %p87 = por %p85, %p86
      %p88 = scmp.ne.s32.totalorder %s80, %s83
      %p89 = scmp.eq.s32.totalorder %s30, 0
      %p90 = por %p88, %p89
      %p91 = scmp.ne.s32.totalorder %s80, %s83
      %p92 = scmp.eq.s32.totalorder %s35, 1
      %p93 = por %p91, %p92
      %p94 = scmp.ne.s32.totalorder %s83, %s84
      %p95 = scmp.eq.s32.totalorder %s35, 0
      %p96 = por %p94, %p95
      %p97 = scmp.ne.s32.totalorder %s83, %s84
      %p98 = scmp.eq.s32.totalorder %s36, 1
      %p99 = por %p97, %p98
      %p101 = scmp.ne.s32.totalorder %s84, %s100
      %p102 = scmp.eq.s32.totalorder %s36, 0
      %p103 = por %p101, %p102
      %s104 = ssub.s32 %s37, %s49
      %p105 = scmp.eq.s32.totalorder %s104, 0
      %s107 = sadd.s32 %s106, 1
      %s108 = scalar_select %p105, %s106, %s107
      %p111 = pneg %p105
      %p112 = scmp.eq.s32.totalorder %s30, 1
      %p113 = por %p111, %p112
      %p114 = scmp.ne.s32.totalorder %s106, %s109
      %p115 = scmp.eq.s32.totalorder %s30, 0
      %p116 = por %p114, %p115
      %p117 = scmp.ne.s32.totalorder %s106, %s109
      %p118 = scmp.eq.s32.totalorder %s35, 1
      %p119 = por %p117, %p118
      %p120 = scmp.ne.s32.totalorder %s109, %s110
      %p121 = scmp.eq.s32.totalorder %s35, 0
      %p122 = por %p120, %p121
      %p123 = scmp.ne.s32.totalorder %s109, %s110
      %p124 = scmp.eq.s32.totalorder %s36, 1
      %p125 = por %p123, %p124
      %p127 = scmp.ne.s32.totalorder %s110, %s126
      %p128 = scmp.eq.s32.totalorder %s36, 0
      %p129 = por %p127, %p128
      %s130 = ssub.s32 %s37, %s49
      %p131 = scmp.eq.s32.totalorder %s130, 0
      %s133 = sadd.s32 %s132, 1
      %s134 = scalar_select %p131, %s132, %s133
      %p137 = pneg %p131
      %p138 = scmp.eq.s32.totalorder %s30, 1
      %p139 = por %p137, %p138
      %p140 = scmp.ne.s32.totalorder %s132, %s135
      %p141 = scmp.eq.s32.totalorder %s30, 0
      %p142 = por %p140, %p141
      %p143 = scmp.ne.s32.totalorder %s132, %s135
      %p144 = scmp.eq.s32.totalorder %s35, 1
      %p145 = por %p143, %p144
      %p146 = scmp.ne.s32.totalorder %s135, %s136
      %p147 = scmp.eq.s32.totalorder %s35, 0
      %p148 = por %p146, %p147
      %p149 = scmp.ne.s32.totalorder %s135, %s136
      %p150 = scmp.eq.s32.totalorder %s36, 1
      %p151 = por %p149, %p150
      %p153 = scmp.ne.s32.totalorder %s136, %s152
      %p154 = scmp.eq.s32.totalorder %s36, 0
      %p155 = por %p153, %p154
      %s157 = sadd.s32 %s156, 1
      %p160 = scmp.eq.s32.totalorder %s30, 1
      %p161 = scmp.ne.s32.totalorder %s156, %s158
      %p162 = scmp.eq.s32.totalorder %s30, 0
      %p163 = por %p161, %p162
      %p164 = scmp.ne.s32.totalorder %s156, %s158
      %p165 = scmp.eq.s32.totalorder %s35, 1
      %p166 = por %p164, %p165
      %p167 = scmp.ne.s32.totalorder %s158, %s159
      %p168 = scmp.eq.s32.totalorder %s35, 0
      %p169 = por %p167, %p168
      %p170 = scmp.ne.s32.totalorder %s158, %s159
      %p171 = scmp.eq.s32.totalorder %s36, 1
      %p172 = por %p170, %p171
      %p174 = scmp.ne.s32.totalorder %s159, %s173
      %p175 = scmp.eq.s32.totalorder %s36, 0
      %p176 = por %p174, %p175
      %s178 = sadd.s32 %s177, 1
      %p181 = scmp.eq.s32.totalorder %s30, 1
      %p182 = scmp.ne.s32.totalorder %s177, %s179
      %p183 = scmp.eq.s32.totalorder %s30, 0
      %p184 = por %p182, %p183
      %p185 = scmp.ne.s32.totalorder %s177, %s179
      %p186 = scmp.eq.s32.totalorder %s35, 1
      %p187 = por %p185, %p186
      %p188 = scmp.ne.s32.totalorder %s179, %s180
      %p189 = scmp.eq.s32.totalorder %s35, 0
      %p190 = por %p188, %p189
      %p191 = scmp.ne.s32.totalorder %s179, %s180
      %p192 = scmp.eq.s32.totalorder %s36, 1
      %p193 = por %p191, %p192
      %p195 = scmp.ne.s32.totalorder %s180, %s194
      %p196 = scmp.eq.s32.totalorder %s36, 0
      %p197 = por %p195, %p196
      %s199 = sadd.s32 %s198, 1
      %p202 = scmp.eq.s32.totalorder %s30, 1
      %p203 = scmp.ne.s32.totalorder %s198, %s200
      %p204 = scmp.eq.s32.totalorder %s30, 0
      %p205 = por %p203, %p204
      %p206 = scmp.ne.s32.totalorder %s198, %s200
      %p207 = scmp.eq.s32.totalorder %s35, 1
      %p208 = por %p206, %p207
      %p209 = scmp.ne.s32.totalorder %s200, %s201
      %p210 = scmp.eq.s32.totalorder %s35, 0
      %p211 = por %p209, %p210
      %p212 = scmp.ne.s32.totalorder %s200, %s201
      %p213 = scmp.eq.s32.totalorder %s36, 1
      %p214 = por %p212, %p213
      %p216 = scmp.ne.s32.totalorder %s201, %s215
      %p217 = scmp.eq.s32.totalorder %s36, 0
      %p218 = por %p216, %p217
      %s220 = sadd.s32 %s219, 1
      %p223 = scmp.eq.s32.totalorder %s30, 1
      %p224 = scmp.ne.s32.totalorder %s219, %s221
      %p225 = scmp.eq.s32.totalorder %s30, 0
      %p226 = por %p224, %p225
      %p227 = scmp.ne.s32.totalorder %s219, %s221
      %p228 = scmp.eq.s32.totalorder %s35, 1
      %p229 = por %p227, %p228
      %p230 = scmp.ne.s32.totalorder %s221, %s222
      %p231 = scmp.eq.s32.totalorder %s35, 0
      %p232 = por %p230, %p231
      %p233 = scmp.ne.s32.totalorder %s221, %s222
      %p234 = scmp.eq.s32.totalorder %s36, 1
      %p235 = por %p233, %p234
      %p237 = scmp.ne.s32.totalorder %s222, %s236
      %p238 = scmp.eq.s32.totalorder %s36, 0
      %p239 = por %p237, %p238
      %s241 = sadd.s32 %s240, 1
      %p244 = scmp.eq.s32.totalorder %s30, 1
      %p245 = scmp.ne.s32.totalorder %s240, %s242
      %p246 = scmp.eq.s32.totalorder %s30, 0
      %p247 = por %p245, %p246
      %p248 = scmp.ne.s32.totalorder %s240, %s242
      %p249 = scmp.eq.s32.totalorder %s35, 1
      %p250 = por %p248, %p249
      %p251 = scmp.ne.s32.totalorder %s242, %s243
      %p252 = scmp.eq.s32.totalorder %s35, 0
      %p253 = por %p251, %p252
      %p254 = scmp.ne.s32.totalorder %s242, %s243
      %p255 = scmp.eq.s32.totalorder %s36, 1
      %p256 = por %p254, %p255
      %p258 = scmp.ne.s32.totalorder %s243, %s257
      %p259 = scmp.eq.s32.totalorder %s36, 0
      %p260 = por %p258, %p259
      %s262 = sadd.s32 %s261, 1
      %p265 = scmp.eq.s32.totalorder %s30, 1
      %p266 = scmp.ne.s32.totalorder %s261, %s263
      %p267 = scmp.eq.s32.totalorder %s30, 0
      %p268 = por %p266, %p267
      %p269 = scmp.ne.s32.totalorder %s261, %s263
      %p270 = scmp.eq.s32.totalorder %s35, 1
      %p271 = por %p269, %p270
      %p272 = scmp.ne.s32.totalorder %s263, %s264
      %p273 = scmp.eq.s32.totalorder %s35, 0
      %p274 = por %p272, %p273
      %p275 = scmp.ne.s32.totalorder %s263, %s264
      %p276 = scmp.eq.s32.totalorder %s36, 1
      %p277 = por %p275, %p276
      %p279 = scmp.ne.s32.totalorder %s264, %s278
      %p280 = scmp.eq.s32.totalorder %s36, 0
      %p281 = por %p279, %p280
      %s283 = sadd.s32 %s282, 1
      %p286 = scmp.eq.s32.totalorder %s30, 1
      %p287 = scmp.ne.s32.totalorder %s282, %s284
      %p288 = scmp.eq.s32.totalorder %s30, 0
      %p289 = por %p287, %p288
      %p290 = scmp.ne.s32.totalorder %s282, %s284
      %p291 = scmp.eq.s32.totalorder %s35, 1
      %p292 = por %p290, %p291
      %p293 = scmp.ne.s32.totalorder %s284, %s285
      %p294 = scmp.eq.s32.totalorder %s35, 0
      %p295 = por %p293, %p294
      %p296 = scmp.ne.s32.totalorder %s284, %s285
      %p297 = scmp.eq.s32.totalorder %s36, 1
      %p298 = por %p296, %p297
      %p300 = scmp.ne.s32.totalorder %s285, %s299
      %p301 = scmp.eq.s32.totalorder %s36, 0
      %p302 = por %p300, %p301
      %s304 = sadd.s32 %s303, 1
      %p307 = scmp.eq.s32.totalorder %s30, 1
      %p308 = scmp.ne.s32.totalorder %s303, %s305
      %p309 = scmp.eq.s32.totalorder %s30, 0
      %p310 = por %p308, %p309
      %p311 = scmp.ne.s32.totalorder %s303, %s305
      %p312 = scmp.eq.s32.totalorder %s35, 1
      %p313 = por %p311, %p312
      %p314 = scmp.ne.s32.totalorder %s305, %s306
      %p315 = scmp.eq.s32.totalorder %s35, 0
      %p316 = por %p314, %p315
      %p317 = scmp.ne.s32.totalorder %s305, %s306
      %p318 = scmp.eq.s32.totalorder %s36, 1
      %p319 = por %p317, %p318
      %p321 = scmp.ne.s32.totalorder %s306, %s320
      %p322 = scmp.eq.s32.totalorder %s36, 0
      %p323 = por %p321, %p322
      %s325 = sadd.s32 %s324, 1
      %p328 = scmp.eq.s32.totalorder %s30, 1
      %p329 = scmp.ne.s32.totalorder %s324, %s326
      %p330 = scmp.eq.s32.totalorder %s30, 0
      %p331 = por %p329, %p330
      %p332 = scmp.ne.s32.totalorder %s324, %s326
      %p333 = scmp.eq.s32.totalorder %s35, 1
      %p334 = por %p332, %p333
      %p335 = scmp.ne.s32.totalorder %s326, %s327
      %p336 = scmp.eq.s32.totalorder %s35, 0
      %p337 = por %p335, %p336
      %p338 = scmp.ne.s32.totalorder %s326, %s327
      %p339 = scmp.eq.s32.totalorder %s36, 1
      %p340 = por %p338, %p339
      %p342 = scmp.ne.s32.totalorder %s327, %s341
      %p343 = scmp.eq.s32.totalorder %s36, 0
      %p344 = por %p342, %p343
      %s346 = sadd.s32 %s345, 1
      %p349 = scmp.eq.s32.totalorder %s30, 1
      %p350 = scmp.ne.s32.totalorder %s345, %s347
      %p351 = scmp.eq.s32.totalorder %s30, 0
      %p352 = por %p350, %p351
      %p353 = scmp.ne.s32.totalorder %s345, %s347
      %p354 = scmp.eq.s32.totalorder %s35, 1
      %p355 = por %p353, %p354
      %p356 = scmp.ne.s32.totalorder %s347, %s348
      %p357 = scmp.eq.s32.totalorder %s35, 0
      %p358 = por %p356, %p357
      %p359 = scmp.ne.s32.totalorder %s347, %s348
      %p360 = scmp.eq.s32.totalorder %s36, 1
      %p361 = por %p359, %p360
      %p363 = scmp.ne.s32.totalorder %s348, %s362
      %p364 = scmp.eq.s32.totalorder %s36, 0
      %p365 = por %p363, %p364
      %s367 = sadd.s32 %s366, 1
      %p370 = scmp.eq.s32.totalorder %s30, 1
      %p371 = scmp.ne.s32.totalorder %s366, %s368
      %p372 = scmp.eq.s32.totalorder %s30, 0
      %p373 = por %p371, %p372
      %p374 = scmp.ne.s32.totalorder %s366, %s368
      %p375 = scmp.eq.s32.totalorder %s35, 1
      %p376 = por %p374, %p375
      %p377 = scmp.ne.s32.totalorder %s368, %s369
      %p378 = scmp.eq.s32.totalorder %s35, 0
      %p379 = por %p377, %p378
      %p380 = scmp.ne.s32.totalorder %s368, %s369
      %p381 = scmp.eq.s32.totalorder %s36, 1
      %p382 = por %p380, %p381
      %p384 = scmp.ne.s32.totalorder %s369, %s383
      %p385 = scmp.eq.s32.totalorder %s36, 0
      %p386 = por %p384, %p385
      %s388 = sadd.s32 %s387, 1
      %p391 = scmp.eq.s32.totalorder %s30, 1
      %p392 = scmp.ne.s32.totalorder %s387, %s389
      %p393 = scmp.eq.s32.totalorder %s30, 0
      %p394 = por %p392, %p393
      %p395 = scmp.ne.s32.totalorder %s387, %s389
      %p396 = scmp.eq.s32.totalorder %s35, 1
      %p397 = por %p395, %p396
      %p398 = scmp.ne.s32.totalorder %s389, %s390
      %p399 = scmp.eq.s32.totalorder %s35, 0
      %p400 = por %p398, %p399
      %p401 = scmp.ne.s32.totalorder %s389, %s390
      %p402 = scmp.eq.s32.totalorder %s36, 1
      %p403 = por %p401, %p402
      %p405 = scmp.ne.s32.totalorder %s390, %s404
      %p406 = scmp.eq.s32.totalorder %s36, 0
      %p407 = por %p405, %p406
      %s409 = sadd.s32 %s408, 1
      %p412 = scmp.eq.s32.totalorder %s30, 1
      %p413 = scmp.ne.s32.totalorder %s408, %s410
      %p414 = scmp.eq.s32.totalorder %s30, 0
      %p415 = por %p413, %p414
      %p416 = scmp.ne.s32.totalorder %s408, %s410
      %p417 = scmp.eq.s32.totalorder %s35, 1
      %p418 = por %p416, %p417
      %p419 = scmp.ne.s32.totalorder %s410, %s411
      %p420 = scmp.eq.s32.totalorder %s35, 0
      %p421 = por %p419, %p420
      %p422 = scmp.ne.s32.totalorder %s410, %s411
      %p423 = scmp.eq.s32.totalorder %s36, 1
      %p424 = por %p422, %p423
      %p426 = scmp.ne.s32.totalorder %s411, %s425
      %p427 = scmp.eq.s32.totalorder %s36, 0
      %p428 = por %p426, %p427
      %s429 = ssub.s32 %s37, %s49
      %s430 = ssub.s32 %s38, %s45
      %s431 = sor.u32 %s429, %s430
      %p432 = scmp.eq.s32.totalorder %s431, 0
      %s434 = sadd.s32 %s433, 1
      %s435 = scalar_select %p432, %s433, %s434
      %p438 = pneg %p432
      %p439 = scmp.eq.s32.totalorder %s30, 1
      %p440 = por %p438, %p439
      %p441 = scmp.ne.s32.totalorder %s433, %s436
      %p442 = scmp.eq.s32.totalorder %s30, 0
      %p443 = por %p441, %p442
      %p444 = scmp.ne.s32.totalorder %s433, %s436
      %p445 = scmp.eq.s32.totalorder %s35, 1
      %p446 = por %p444, %p445
      %p447 = scmp.ne.s32.totalorder %s436, %s437
      %p448 = scmp.eq.s32.totalorder %s35, 0
      %p449 = por %p447, %p448
      %p450 = scmp.ne.s32.totalorder %s436, %s437
      %p451 = scmp.eq.s32.totalorder %s36, 1
      %p452 = por %p450, %p451
      %p454 = scmp.ne.s32.totalorder %s437, %s453
      %p455 = scmp.eq.s32.totalorder %s36, 0
      %p456 = por %p454, %p455
      %p457 = scmp.le.s32.totalorder 1, %s30
      %p458 = scmp.lt.s32.totalorder %s30, 3
      %p459 = pnand %p457, %p458
      %p460 = pneg %p459
      // Predicated region
      $region9: #{transformer_block_forward.1} parent=5 // pred_check
        _
      $region10: #{transformer_block_forward.1} parent=5 // pred_check_branch
        %462 = sbr.rel (%p459) target = $region12
      $region11: #{transformer_block_forward.1} parent=5 // pred_region
        %s463 = ssub.s32 %s30, 1
        // Predicated region
        $region13: #{transformer_block_forward.1} parent=11 // pred_check
          %p464 = pneg %p169
        $region14: #{transformer_block_forward.1} parent=11 // pred_check_branch
          %466 = sbr.rel (%p464) target = $region16
        $region15: #{transformer_block_forward.1} parent=11 // pred_region
          _
        $region16: #{transformer_block_forward.1} parent=11 // pred_fallthru
          _
        // Predicated region
        $region17: #{transformer_block_forward.1} parent=11 // pred_check
          %p467 = pneg %p190
        $region18: #{transformer_block_forward.1} parent=11 // pred_check_branch
          %469 = sbr.rel (%p467) target = $region20
        $region19: #{transformer_block_forward.1} parent=11 // pred_region
          %s471 = ssub.s32 1024, 1024
          %472 = vsyncadd [#allocation3], %s471
          %s473 = sshll.u32 [#allocation2], 4
          %s474 = int_to_ptr.vmem [resolvable:$true] %s473
          %479 = dma.hbm_to_vmem [thread:$0]  %s5, 1024, %s474, [#allocation3], 64, 64, 4
        $region20: #{transformer_block_forward.1} parent=11 // pred_fallthru
          _
        // Predicated region
        $region21: #{transformer_block_forward.1} parent=11 // pred_check
          %p480 = pneg %p211
        $region22: #{transformer_block_forward.1} parent=11 // pred_check_branch
          %482 = sbr.rel (%p480) target = $region24
        $region23: #{transformer_block_forward.1} parent=11 // pred_region
          %s484 = ssub.s32 1024, 1024
          %485 = vsyncadd [#allocation6], %s484
          %s486 = sshll.u32 [#allocation5], 4
          %s487 = int_to_ptr.vmem [resolvable:$true] %s486
          %492 = dma.hbm_to_vmem [thread:$0]  %s6, 1024, %s487, [#allocation6], 64, 64, 4
        $region24: #{transformer_block_forward.1} parent=11 // pred_fallthru
          _
        // Predicated region
        $region25: #{transformer_block_forward.1} parent=11 // pred_check
          %p493 = pneg %p232
        $region26: #{transformer_block_forward.1} parent=11 // pred_check_branch
          %495 = sbr.rel (%p493) target = $region28
        $region27: #{transformer_block_forward.1} parent=11 // pred_region
          %s497 = ssub.s32 1024, 1024
          %498 = vsyncadd [#allocation6], %s497
          %s499 = sshll.u32 [#allocation7], 4
          %s500 = int_to_ptr.vmem [resolvable:$true] %s499
          %505 = dma.hbm_to_vmem [thread:$0]  %s7, 1024, %s500, [#allocation6], 64, 64, 4
        $region28: #{transformer_block_forward.1} parent=11 // pred_fallthru
          _
        // Predicated region
        $region29: #{transformer_block_forward.1} parent=11 // pred_check
          %p506 = pneg %p253
        $region30: #{transformer_block_forward.1} parent=11 // pred_check_branch
          %508 = sbr.rel (%p506) target = $region32
        $region31: #{transformer_block_forward.1} parent=11 // pred_region
          _
        $region32: #{transformer_block_forward.1} parent=11 // pred_fallthru
          _
        // Predicated region
        $region33: #{transformer_block_forward.1} parent=11 // pred_check
          %p509 = pneg %p274
        $region34: #{transformer_block_forward.1} parent=11 // pred_check_branch
          %511 = sbr.rel (%p509) target = $region36
        $region35: #{transformer_block_forward.1} parent=11 // pred_region
          _
        $region36: #{transformer_block_forward.1} parent=11 // pred_fallthru
          _
        // Predicated region
        $region37: #{transformer_block_forward.1} parent=11 // pred_check
          %p512 = pneg %p295
        $region38: #{transformer_block_forward.1} parent=11 // pred_check_branch
          %514 = sbr.rel (%p512) target = $region40
        $region39: #{transformer_block_forward.1} parent=11 // pred_region
          _
        $region40: #{transformer_block_forward.1} parent=11 // pred_fallthru
          _
        // Predicated region
        $region41: #{transformer_block_forward.1} parent=11 // pred_check
          %p515 = pneg %p316
        $region42: #{transformer_block_forward.1} parent=11 // pred_check_branch
          %517 = sbr.rel (%p515) target = $region44
        $region43: #{transformer_block_forward.1} parent=11 // pred_region
          %s519 = ssub.s32 4096, 4096
          %520 = vsyncadd [#allocation9], %s519
          %s521 = sshll.u32 [#allocation8], 4
          %s522 = int_to_ptr.vmem [resolvable:$true] %s521
          %527 = dma.hbm_to_vmem [thread:$0]  %s11, 4096, %s522, [#allocation9], 256, 256, 16
        $region44: #{transformer_block_forward.1} parent=11 // pred_fallthru
          _
        // Predicated region
        $region45: #{transformer_block_forward.1} parent=11 // pred_check
          %p528 = pneg %p337
        $region46: #{transformer_block_forward.1} parent=11 // pred_check_branch
          %530 = sbr.rel (%p528) target = $region48
        $region47: #{transformer_block_forward.1} parent=11 // pred_region
          _
        $region48: #{transformer_block_forward.1} parent=11 // pred_fallthru
          _
        // Predicated region
        $region49: #{transformer_block_forward.1} parent=11 // pred_check
          %p531 = pneg %p358
        $region50: #{transformer_block_forward.1} parent=11 // pred_check_branch
          %533 = sbr.rel (%p531) target = $region52
        $region51: #{transformer_block_forward.1} parent=11 // pred_region
          %s535 = ssub.s32 4096, 4096
          %536 = vsyncadd [#allocation9], %s535
          %s537 = sshll.u32 [#allocation10], 4
          %s538 = int_to_ptr.vmem [resolvable:$true] %s537
          %543 = dma.hbm_to_vmem [thread:$0]  %s13, 4096, %s538, [#allocation9], 64, 64, 4
        $region52: #{transformer_block_forward.1} parent=11 // pred_fallthru
          _
        // Predicated region
        $region53: #{transformer_block_forward.1} parent=11 // pred_check
          %p544 = pneg %p379
        $region54: #{transformer_block_forward.1} parent=11 // pred_check_branch
          %546 = sbr.rel (%p544) target = $region56
        $region55: #{transformer_block_forward.1} parent=11 // pred_region
          _
        $region56: #{transformer_block_forward.1} parent=11 // pred_fallthru
          _
        // Predicated region
        $region57: #{transformer_block_forward.1} parent=11 // pred_check
          %p547 = pneg %p400
        $region58: #{transformer_block_forward.1} parent=11 // pred_check_branch
          %549 = sbr.rel (%p547) target = $region60
        $region59: #{transformer_block_forward.1} parent=11 // pred_region
          _
        $region60: #{transformer_block_forward.1} parent=11 // pred_fallthru
          _
        // Predicated region
        $region61: #{transformer_block_forward.1} parent=11 // pred_check
          %p550 = pneg %p421
        $region62: #{transformer_block_forward.1} parent=11 // pred_check_branch
          %552 = sbr.rel (%p550) target = $region64
        $region63: #{transformer_block_forward.1} parent=11 // pred_region
          %s554 = ssub.s32 16, 16
          %555 = vsyncadd [#allocation12], %s554
          %s557 = sshll.u32 [#allocation11], 4
          %s558 = int_to_ptr.vmem [resolvable:$true] %s557
          %560 = dma.hbm_to_vmem [thread:$0]  %s16, 16, %s558, [#allocation12]
        $region64: #{transformer_block_forward.1} parent=11 // pred_fallthru
          _
      $region12: #{transformer_block_forward.1} parent=5 // pred_fallthru
        _
      %p561 = scmp.lt.s32.totalorder %s30, 2
      // Predicated region
      $region65: #{transformer_block_forward.1} parent=5 // pred_check
        %p562 = pneg %p561
      $region66: #{transformer_block_forward.1} parent=5 // pred_check_branch
        %564 = sbr.rel (%p562) target = $region68
      $region67: #{transformer_block_forward.1} parent=5 // pred_region
        // Predicated region
        $region69: #{transformer_block_forward.1} parent=67 // pred_check
          %p565 = pneg %p64
        $region70: #{transformer_block_forward.1} parent=67 // pred_check_branch
          %567 = sbr.rel (%p565) target = $region72
        $region71: #{transformer_block_forward.1} parent=67 // pred_region
          %p568 = scmp.lt.s32.totalorder %s37, 1
          %s569 = scalar_select %p568, %s37, 1
          %p570 = scmp.lt.s32.totalorder %s38, 0
          %s571 = scalar_select %p570, %s38, 0
          %s572 = sadd.s32 %s571, %s569
          %s573 = smul.addr %s572, 4
          %s574 = scalar_lea.vmem %s0, %s573
        $region72: #{transformer_block_forward.1} parent=67 // pred_fallthru
          _
        // Predicated region
        $region73: #{transformer_block_forward.1} parent=67 // pred_check
          %p575 = pneg %p90
        $region74: #{transformer_block_forward.1} parent=67 // pred_check_branch
          %577 = sbr.rel (%p575) target = $region76
        $region75: #{transformer_block_forward.1} parent=67 // pred_region
          %p578 = scmp.lt.s32.totalorder %s37, 1
          %s579 = scalar_select %p578, %s37, 1
          %s580 = smul.addr %s579, 4
          %s581 = scalar_lea.vmem %s1, %s580
        $region76: #{transformer_block_forward.1} parent=67 // pred_fallthru
          _
        // Predicated region
        $region77: #{transformer_block_forward.1} parent=67 // pred_check
          %p582 = pneg %p116
        $region78: #{transformer_block_forward.1} parent=67 // pred_check_branch
          %584 = sbr.rel (%p582) target = $region80
        $region79: #{transformer_block_forward.1} parent=67 // pred_region
          %p585 = scmp.lt.s32.totalorder %s37, 1
          %s586 = scalar_select %p585, %s37, 1
          %s587 = smul.addr %s586, 4
          %s588 = scalar_lea.vmem %s2, %s587
        $region80: #{transformer_block_forward.1} parent=67 // pred_fallthru
          _
        // Predicated region
        $region81: #{transformer_block_forward.1} parent=67 // pred_check
          %p589 = pneg %p142
        $region82: #{transformer_block_forward.1} parent=67 // pred_check_branch
          %591 = sbr.rel (%p589) target = $region84
        $region83: #{transformer_block_forward.1} parent=67 // pred_region
          %p592 = scmp.lt.s32.totalorder %s37, 1
          %s593 = scalar_select %p592, %s37, 1
          %s594 = scalar_lea.vmem %s3, %s593
        $region84: #{transformer_block_forward.1} parent=67 // pred_fallthru
          _
      $region68: #{transformer_block_forward.1} parent=5 // pred_fallthru
        _
      %p595 = scmp.le.s32.totalorder 1, %s30
      %p596 = scmp.lt.s32.totalorder %s30, 3
      %p597 = pnand %p595, %p596
      %p598 = pneg %p597
      // Predicated region
      $region85: #{transformer_block_forward.1} parent=5 // pred_check
        _
      $region86: #{transformer_block_forward.1} parent=5 // pred_check_branch
        %600 = sbr.rel (%p597) target = $region88
      $region87: #{transformer_block_forward.1} parent=5 // pred_region
        %s601 = ssub.s32 %s30, 1
        // Predicated region
        $region89: #{transformer_block_forward.1} parent=87 // pred_check
          %p602 = pneg %p190
        $region90: #{transformer_block_forward.1} parent=87 // pred_check_branch
          %604 = sbr.rel (%p602) target = $region92
        $region91: #{transformer_block_forward.1} parent=87 // pred_region
          %605 = dma.done [#allocation3], 1024
        $region92: #{transformer_block_forward.1} parent=87 // pred_fallthru
          _
        // Predicated region
        $region93: #{transformer_block_forward.1} parent=87 // pred_check
          %p606 = pneg %p211
        $region94: #{transformer_block_forward.1} parent=87 // pred_check_branch
          %608 = sbr.rel (%p606) target = $region96
        $region95: #{transformer_block_forward.1} parent=87 // pred_region
          %609 = dma.done [#allocation6], 1024
        $region96: #{transformer_block_forward.1} parent=87 // pred_fallthru
          _
        // Predicated region
        $region97: #{transformer_block_forward.1} parent=87 // pred_check
          %p610 = pneg %p232
        $region98: #{transformer_block_forward.1} parent=87 // pred_check_branch
          %612 = sbr.rel (%p610) target = $region100
        $region99: #{transformer_block_forward.1} parent=87 // pred_region
          %613 = dma.done [#allocation6], 1024
        $region100: #{transformer_block_forward.1} parent=87 // pred_fallthru
          _
        // Predicated region
        $region101: #{transformer_block_forward.1} parent=87 // pred_check
          %p614 = pneg %p316
        $region102: #{transformer_block_forward.1} parent=87 // pred_check_branch
          %616 = sbr.rel (%p614) target = $region104
        $region103: #{transformer_block_forward.1} parent=87 // pred_region
          %617 = dma.done [#allocation9], 4096
        $region104: #{transformer_block_forward.1} parent=87 // pred_fallthru
          _
        // Predicated region
        $region105: #{transformer_block_forward.1} parent=87 // pred_check
          %p618 = pneg %p358
        $region106: #{transformer_block_forward.1} parent=87 // pred_check_branch
          %620 = sbr.rel (%p618) target = $region108
        $region107: #{transformer_block_forward.1} parent=87 // pred_region
          %621 = dma.done [#allocation9], 4096
        $region108: #{transformer_block_forward.1} parent=87 // pred_fallthru
          _
        // Predicated region
        $region109: #{transformer_block_forward.1} parent=87 // pred_check
          %p622 = pneg %p421
        $region110: #{transformer_block_forward.1} parent=87 // pred_check_branch
          %624 = sbr.rel (%p622) target = $region112
        $region111: #{transformer_block_forward.1} parent=87 // pred_region
          %625 = dma.done [#allocation12], 16
        $region112: #{transformer_block_forward.1} parent=87 // pred_fallthru
          _
        %p626 = scmp.lt.s32.totalorder %s39, 1
        %s627 = scalar_select %p626, %s39, 1
        %p628 = scmp.lt.s32.totalorder %s40, 0
        %s629 = scalar_select %p628, %s40, 0
        %s630 = sadd.s32 %s629, %s627
        %s631 = smul.addr %s630, 4
        %s632 = scalar_lea.vmem %s0, %s631
        %p633 = pneg %p70
        %p634 = pneg %p67
        %p635 = scmp.lt.s32.totalorder %s39, 1
        %s636 = scalar_select %p635, %s39, 1
        %s637 = smul.addr %s636, 4
        %s638 = scalar_lea.vmem %s1, %s637
        %p639 = pneg %p96
        %p640 = pneg %p93
        %p641 = scmp.lt.s32.totalorder %s39, 1
        %s642 = scalar_select %p641, %s39, 1
        %s643 = smul.addr %s642, 4
        %s644 = scalar_lea.vmem %s2, %s643
        %p645 = pneg %p122
        %p646 = pneg %p119
        %p647 = scmp.lt.s32.totalorder %s39, 1
        %s648 = scalar_select %p647, %s39, 1
        %s649 = scalar_lea.vmem %s3, %s648
        %p650 = pneg %p148
        %p651 = pneg %p145
        %p652 = pneg %p169
        %p653 = pneg %p166
        %p654 = pneg %p190
        %p655 = pneg %p187
        %p656 = pneg %p211
        %p657 = pneg %p208
        %p658 = pneg %p232
        %p659 = pneg %p229
        %p660 = pneg %p253
        %p661 = pneg %p250
        %p662 = pneg %p274
        %p663 = pneg %p271
        %p664 = pneg %p295
        %p665 = pneg %p292
        %p666 = pneg %p316
        %p667 = pneg %p313
        %p668 = pneg %p337
        %p669 = pneg %p334
        %p670 = pneg %p358
        %p671 = pneg %p355
        %p672 = pneg %p379
        %p673 = pneg %p376
        %p674 = pneg %p400
        %p675 = pneg %p397
        %p676 = pneg %p421
        %p677 = pneg %p418
        %p678 = pneg %p449
        %p679 = pneg %p446
        %s680 = sand.u32 %s436, 1
        %s681 = scalar_lea.sflag [#allocation4], %s680
        %s682 = sand.u32 %s436, 1
        %s683 = smul.addr %s682, 8
        %s684 = scalar_lea.vmem [#allocation13], %s683
        %p685 = scmp.lt.s32.totalorder %s39, 1
        %s686 = scalar_select %p685, %s39, 1
        %p687 = scmp.lt.s32.totalorder %s40, 0
        %s688 = scalar_select %p687, %s40, 0
        %s689 = sadd.s32 %s688, %s686
        %s690 = smul.addr %s689, 4
        %s691 = scalar_lea.vmem %s0, %s690
        %p692 = scmp.lt.s32.totalorder %s39, 1
        %s693 = scalar_select %p692, %s39, 1
        %s694 = smul.addr %s693, 4
        %s695 = scalar_lea.vmem %s1, %s694
        %p696 = scmp.lt.s32.totalorder %s39, 1
        %s697 = scalar_select %p696, %s39, 1
        %s698 = smul.addr %s697, 4
        %s699 = scalar_lea.vmem %s2, %s698
        %p700 = scmp.lt.s32.totalorder %s39, 1
        %s701 = scalar_select %p700, %s39, 1
        %s702 = scalar_lea.vmem %s3, %s701
        %v704 = vld [vmem:[%s691] sm:$0xf]
        %v705 = vld [vmem:[%s695] sm:$0xf]
        %v706 = vld [vmem:[%s699] sm:$0xf]
        %v707 = vld [vmem:[%s4] sm:$0xf]
        %v708 = vld [vmem:[%s4 + $0x4] sm:$0xf]
        %v709 = vld [vmem:[%s4 + $0x8] sm:$0xf]
        %v710 = vld [vmem:[%s4 + $0xc] sm:$0xf]
        %v711 = vld [vmem:[%s4 + $0x10] sm:$0xf]
        %v712 = vld [vmem:[%s4 + $0x14] sm:$0xf]
        %v713 = vld [vmem:[%s4 + $0x18] sm:$0xf]
        %v714 = vld [vmem:[%s4 + $0x1c] sm:$0xf]
        %v715 = vld [vmem:[%s4 + $0x20] sm:$0xf]
        %v716 = vld [vmem:[%s4 + $0x24] sm:$0xf]
        %v717 = vld [vmem:[%s4 + $0x28] sm:$0xf]
        %v718 = vld [vmem:[%s4 + $0x2c] sm:$0xf]
        %v719 = vld [vmem:[%s4 + $0x30] sm:$0xf]
        %v720 = vld [vmem:[%s4 + $0x34] sm:$0xf]
        %v721 = vld [vmem:[%s4 + $0x38] sm:$0xf]
        %v722 = vld [vmem:[%s4 + $0x3c] sm:$0xf]
        %v739 = vunpack.c.l.b16 %v707
        %v740 = vunpack.c.l.b16 %v708
        %v741 = vunpack.c.l.b16 %v709
        %v742 = vunpack.c.l.b16 %v710
        %v743 = vunpack.c.l.b16 %v711
        %v744 = vunpack.c.l.b16 %v712
        %v745 = vunpack.c.l.b16 %v713
        %v746 = vunpack.c.l.b16 %v714
        %v747 = vunpack.c.l.b16 %v715
        %v748 = vunpack.c.l.b16 %v716
        %v749 = vunpack.c.l.b16 %v717
        %v750 = vunpack.c.l.b16 %v718
        %v751 = vunpack.c.l.b16 %v719
        %v752 = vunpack.c.l.b16 %v720
        %v753 = vunpack.c.l.b16 %v721
        %v754 = vunpack.c.l.b16 %v722
        %v755 = vpack.c.b16 %v740, %v739
        %v756 = vpack.c.b16 %v742, %v741
        %v757 = vpack.c.b16 %v744, %v743
        %v758 = vpack.c.b16 %v746, %v745
        %v759 = vpack.c.b16 %v748, %v747
        %v760 = vpack.c.b16 %v750, %v749
        %v761 = vpack.c.b16 %v752, %v751
        %v762 = vpack.c.b16 %v754, %v753
        %771 = vmatprep.subr.bf16.mxu0 0
        %772 = vmatpush1.bf16.msra.mxu0 %v755
        %773 = vmatprep.subr.bf16.mxu0 0
        %774 = vmatpush1.bf16.msra.mxu0 %v756
        %775 = vmatprep.subr.bf16.mxu0 0
        %776 = vmatpush1.bf16.msra.mxu0 %v757
        %777 = vmatprep.subr.bf16.mxu0 0
        %778 = vmatpush1.bf16.msra.mxu0 %v758
        %779 = vmatprep.subr.bf16.mxu0 0
        %780 = vmatpush1.bf16.msra.mxu0 %v759
        %781 = vmatprep.subr.bf16.mxu0 0
        %782 = vmatpush1.bf16.msra.mxu0 %v760
        %783 = vmatprep.subr.bf16.mxu0 0
        %784 = vmatpush1.bf16.msra.mxu0 %v761
        %785 = vmatprep.subr.bf16.mxu0 0
        %786 = vmatpush1.bf16.msra.mxu0 %v762
        %787 = vmatprep.subr.bf16.mxu0 0
        %788 = vmatpush1.bf16.msra.mxu0 0
        %789 = vmatprep.subr.bf16.mxu0 0
        %790 = vmatpush1.bf16.msra.mxu0 0
        %791 = vmatprep.subr.bf16.mxu0 0
        %792 = vmatpush1.bf16.msra.mxu0 0
        %793 = vmatprep.subr.bf16.mxu0 0
        %794 = vmatpush1.bf16.msra.mxu0 0
        %795 = vmatprep.subr.bf16.mxu0 0
        %796 = vmatpush1.bf16.msra.mxu0 0
        %797 = vmatprep.subr.bf16.mxu0 0
        %798 = vmatpush1.bf16.msra.mxu0 0
        %799 = vmatprep.subr.bf16.mxu0 0
        %800 = vmatpush1.bf16.msra.mxu0 0
        %801 = vmatprep.subr.bf16.mxu0 0
        %802 = vmatpush1.bf16.msra.mxu0 0
        %803 = vmatprep.mubr.bf16.mxu0 0
        %804 = vmatmul.mubr.bf16.gmra.mrb[0].mxu0 %v704
        %v805 = vpop.f32.mrb[0].mxu0
        %v806 = vadd.f32 0.0, %v805
        %v807 = vpop.f32.mrb[0].mxu0
        %v808 = vpop.f32.mrb[0].mxu0
        %v809 = vpop.f32.mrb[0].mxu0
        %810 = vdwg.mxu0
        %v811 = vpack.c.bf16 %v806, %v806
        %813 = vrot.lane.b32.xlu0 %v811, 96
        %v814 = vpop.permute.xlu0 %813
        %815 = vrot.lane.b32.xlu0 %v811, 64
        %v816 = vpop.permute.xlu0 %815
        %817 = vrot.lane.b32.xlu0 %v811, 32
        %v818 = vpop.permute.xlu0 %817
        %v820 = vunpack.c.l.s4 1983009808
        %v821 = vunpack.c.0.s8 %v820
        %v822 = vlaneseq
        %v823 = vshrl.u32 %v822, 7
        %v824 = vsub.s32 %v821, %v823
        %v825 = vrot.slane %v811, %v824
        %v828 = vunpack.c.l.s4 1983009808
        %v829 = vunpack.c.0.s8 %v828
        %v830 = vlaneseq
        %v831 = vshrl.u32 %v830, 7
        %v832 = vsub.s32 %v829, %v831
        %v833 = vrot.slane %v816, %v832
        %v834 = vcombine.low %v825, %v833
        %v835 = vcombine.high %v825, %v833
        %v837 = vunpack.c.l.s4 1934713408
        %v838 = vunpack.c.0.s8 %v837
        %v839 = vlaneseq
        %v840 = vshrl.u32 %v839, 7
        %v841 = vsub.s32 %v838, %v840
        %v842 = vrot.slane %v834, %v841
        %v844 = vunpack.c.l.s4 1934713408
        %v845 = vunpack.c.0.s8 %v844
        %v846 = vlaneseq
        %v847 = vshrl.u32 %v846, 7
        %v848 = vsub.s32 %v845, %v847
        %v849 = vrot.slane %v835, %v848
        %v850 = vcombine.high %v842, 0
        %v851 = vcombine.high %v849, 0
        %v854 = vunpack.c.l.s4 1983009808
        %v855 = vunpack.c.0.s8 %v854
        %v856 = vlaneseq
        %v857 = vshrl.u32 %v856, 7
        %v858 = vsub.s32 %v855, %v857
        %v859 = vrot.slane %v814, %v858
        %v862 = vunpack.c.l.s4 1983009808
        %v863 = vunpack.c.0.s8 %v862
        %v864 = vlaneseq
        %v865 = vshrl.u32 %v864, 7
        %v866 = vsub.s32 %v863, %v865
        %v867 = vrot.slane %v818, %v866
        %v868 = vcombine.low %v859, %v867
        %v869 = vcombine.high %v859, %v867
        %v871 = vunpack.c.l.s4 1934713408
        %v872 = vunpack.c.0.s8 %v871
        %v873 = vlaneseq
        %v874 = vshrl.u32 %v873, 7
        %v875 = vsub.s32 %v872, %v874
        %v876 = vrot.slane %v868, %v875
        %v878 = vunpack.c.l.s4 1934713408
        %v879 = vunpack.c.0.s8 %v878
        %v880 = vlaneseq
        %v881 = vshrl.u32 %v880, 7
        %v882 = vsub.s32 %v879, %v881
        %v883 = vrot.slane %v869, %v882
        %v884 = vcombine.high %v876, 0
        %v885 = vcombine.high %v883, 0
        %v888 = vpack.i.b16 %v876, %v842
        %v890 = vshrl.u32 %v842, 16
        %v891 = vshrl.u32 %v876, 16
        %v892 = vpack.i.b16 %v891, %v890
        %v896 = vpack.i.b16 %v884, %v850
        %v898 = vshrl.u32 %v850, 16
        %v899 = vshrl.u32 %v884, 16
        %v900 = vpack.i.b16 %v899, %v898
        %v904 = vpack.i.b16 %v883, %v849
        %v906 = vshrl.u32 %v849, 16
        %v907 = vshrl.u32 %v883, 16
        %v908 = vpack.i.b16 %v907, %v906
        %v912 = vpack.i.b16 %v885, %v851
        %v914 = vshrl.u32 %v851, 16
        %v915 = vshrl.u32 %v885, 16
        %v916 = vpack.i.b16 %v915, %v914
        %v918 = vcombine.low %v888, %v904
        %v920 = vunpack.c.l.s4 1983009808
        %v921 = vunpack.c.0.s8 %v920
        %v922 = vlaneseq
        %v923 = vshrl.u32 %v922, 7
        %v924 = vsub.s32 %v921, %v923
        %v925 = vrot.slane %v918, %v924
        %v926 = vcombine.low %v896, %v912
        %v928 = vunpack.c.l.s4 1983009808
        %v929 = vunpack.c.0.s8 %v928
        %v930 = vlaneseq
        %v931 = vshrl.u32 %v930, 7
        %v932 = vsub.s32 %v929, %v931
        %v933 = vrot.slane %v926, %v932
        %v934 = vcombine.low %v925, %v933
        %v936 = vunpack.c.l.s4 1934713408
        %v937 = vunpack.c.0.s8 %v936
        %v938 = vlaneseq
        %v939 = vshrl.u32 %v938, 7
        %v940 = vsub.s32 %v937, %v939
        %v941 = vrot.slane %v934, %v940
        %v942 = vcombine.high %v941, 0
        %v943 = vcombine.low %v892, %v908
        %v945 = vunpack.c.l.s4 1983009808
        %v946 = vunpack.c.0.s8 %v945
        %v947 = vlaneseq
        %v948 = vshrl.u32 %v947, 7
        %v949 = vsub.s32 %v946, %v948
        %v950 = vrot.slane %v943, %v949
        %v951 = vcombine.low %v900, %v916
        %v953 = vunpack.c.l.s4 1983009808
        %v954 = vunpack.c.0.s8 %v953
        %v955 = vlaneseq
        %v956 = vshrl.u32 %v955, 7
        %v957 = vsub.s32 %v954, %v956
        %v958 = vrot.slane %v951, %v957
        %v959 = vcombine.low %v950, %v958
        %v961 = vunpack.c.l.s4 1934713408
        %v962 = vunpack.c.0.s8 %v961
        %v963 = vlaneseq
        %v964 = vshrl.u32 %v963, 7
        %v965 = vsub.s32 %v962, %v964
        %v966 = vrot.slane %v959, %v965
        %v967 = vcombine.high %v966, 0
        %v970 = vpack.i.b16 %v966, %v941
        %v971 = vshrl.u32 %v941, 16
        %v972 = vshrl.u32 %v966, 16
        %v973 = vpack.i.b16 %v972, %v971
        %v976 = vpack.i.b16 %v967, %v942
        %v977 = vshrl.u32 %v942, 16
        %v978 = vshrl.u32 %v967, 16
        %v979 = vpack.i.b16 %v978, %v977
        %v980 = vld [vmem:[#allocation2] sm:$0xf]
        %v981 = vld [vmem:[#allocation2 + $0x4] sm:$0xf]
        %v982 = vld [vmem:[#allocation2 + $0x8] sm:$0xf]
        %v983 = vld [vmem:[#allocation2 + $0xc] sm:$0xf]
        %v984 = vld [vmem:[#allocation2 + $0x10] sm:$0xf]
        %v985 = vld [vmem:[#allocation2 + $0x14] sm:$0xf]
        %v986 = vld [vmem:[#allocation2 + $0x18] sm:$0xf]
        %v987 = vld [vmem:[#allocation2 + $0x1c] sm:$0xf]
        %v988 = vld [vmem:[#allocation2 + $0x20] sm:$0xf]
        %v989 = vld [vmem:[#allocation2 + $0x24] sm:$0xf]
        %v990 = vld [vmem:[#allocation2 + $0x28] sm:$0xf]
        %v991 = vld [vmem:[#allocation2 + $0x2c] sm:$0xf]
        %v992 = vld [vmem:[#allocation2 + $0x30] sm:$0xf]
        %v993 = vld [vmem:[#allocation2 + $0x34] sm:$0xf]
        %v994 = vld [vmem:[#allocation2 + $0x38] sm:$0xf]
        %v995 = vld [vmem:[#allocation2 + $0x3c] sm:$0xf]
        %v1012 = vunpack.c.l.b16 %v980
        %v1013 = vunpack.c.l.b16 %v981
        %v1014 = vunpack.c.l.b16 %v982
        %v1015 = vunpack.c.l.b16 %v983
        %v1016 = vunpack.c.l.b16 %v984
        %v1017 = vunpack.c.l.b16 %v985
        %v1018 = vunpack.c.l.b16 %v986
        %v1019 = vunpack.c.l.b16 %v987
        %v1020 = vunpack.c.l.b16 %v988
        %v1021 = vunpack.c.l.b16 %v989
        %v1022 = vunpack.c.l.b16 %v990
        %v1023 = vunpack.c.l.b16 %v991
        %v1024 = vunpack.c.l.b16 %v992
        %v1025 = vunpack.c.l.b16 %v993
        %v1026 = vunpack.c.l.b16 %v994
        %v1027 = vunpack.c.l.b16 %v995
        %v1028 = vpack.c.b16 %v1013, %v1012
        %v1029 = vpack.c.b16 %v1015, %v1014
        %v1030 = vpack.c.b16 %v1017, %v1016
        %v1031 = vpack.c.b16 %v1019, %v1018
        %v1032 = vpack.c.b16 %v1021, %v1020
        %v1033 = vpack.c.b16 %v1023, %v1022
        %v1034 = vpack.c.b16 %v1025, %v1024
        %v1035 = vpack.c.b16 %v1027, %v1026
        %1044 = vmatprep.subr.bf16.mxu0 0
        %1045 = vmatpush1.bf16.msra.mxu0 %v1028
        %1046 = vmatprep.subr.bf16.mxu0 0
        %1047 = vmatpush1.bf16.msra.mxu0 %v1029
        %1048 = vmatprep.subr.bf16.mxu0 0
        %1049 = vmatpush1.bf16.msra.mxu0 %v1030
        %1050 = vmatprep.subr.bf16.mxu0 0
        %1051 = vmatpush1.bf16.msra.mxu0 %v1031
        %1052 = vmatprep.subr.bf16.mxu0 0
        %1053 = vmatpush1.bf16.msra.mxu0 %v1032
        %1054 = vmatprep.subr.bf16.mxu0 0
        %1055 = vmatpush1.bf16.msra.mxu0 %v1033
        %1056 = vmatprep.subr.bf16.mxu0 0
        %1057 = vmatpush1.bf16.msra.mxu0 %v1034
        %1058 = vmatprep.subr.bf16.mxu0 0
        %1059 = vmatpush1.bf16.msra.mxu0 %v1035
        %1060 = vmatprep.subr.bf16.mxu0 0
        %1061 = vmatpush1.bf16.msra.mxu0 0
        %1062 = vmatprep.subr.bf16.mxu0 0
        %1063 = vmatpush1.bf16.msra.mxu0 0
        %1064 = vmatprep.subr.bf16.mxu0 0
        %1065 = vmatpush1.bf16.msra.mxu0 0
        %1066 = vmatprep.subr.bf16.mxu0 0
        %1067 = vmatpush1.bf16.msra.mxu0 0
        %1068 = vmatprep.subr.bf16.mxu0 0
        %1069 = vmatpush1.bf16.msra.mxu0 0
        %1070 = vmatprep.subr.bf16.mxu0 0
        %1071 = vmatpush1.bf16.msra.mxu0 0
        %1072 = vmatprep.subr.bf16.mxu0 0
        %1073 = vmatpush1.bf16.msra.mxu0 0
        %1074 = vmatprep.subr.bf16.mxu0 0
        %1075 = vmatpush1.bf16.msra.mxu0 0
        %1076 = vmatprep.mubr.bf16.mxu0 0
        %1077 = vmatmul.mubr.bf16.gmra.mrb[0].mxu0 %v705
        %v1078 = vpop.f32.mrb[0].mxu0
        %v1079 = vadd.f32 0.0, %v1078
        %v1080 = vpop.f32.mrb[0].mxu0
        %v1081 = vpop.f32.mrb[0].mxu0
        %v1082 = vpop.f32.mrb[0].mxu0
        %1083 = vdwg.mxu0
        %v1084 = vpack.c.bf16 %v1079, %v1079
        %1086 = vrot.lane.b32.xlu0 %v1084, 96
        %v1087 = vpop.permute.xlu0 %1086
        %1088 = vrot.lane.b32.xlu0 %v1084, 64
        %v1089 = vpop.permute.xlu0 %1088
        %1090 = vrot.lane.b32.xlu0 %v1084, 32
        %v1091 = vpop.permute.xlu0 %1090
        %v1093 = vunpack.c.l.s4 1983009808
        %v1094 = vunpack.c.0.s8 %v1093
        %v1095 = vlaneseq
        %v1096 = vshrl.u32 %v1095, 7
        %v1097 = vsub.s32 %v1094, %v1096
        %v1098 = vrot.slane %v1084, %v1097
        %v1101 = vunpack.c.l.s4 1983009808
        %v1102 = vunpack.c.0.s8 %v1101
        %v1103 = vlaneseq
        %v1104 = vshrl.u32 %v1103, 7
        %v1105 = vsub.s32 %v1102, %v1104
        %v1106 = vrot.slane %v1089, %v1105
        %v1107 = vcombine.low %v1098, %v1106
        %v1108 = vcombine.high %v1098, %v1106
        %v1110 = vunpack.c.l.s4 1934713408
        %v1111 = vunpack.c.0.s8 %v1110
        %v1112 = vlaneseq
        %v1113 = vshrl.u32 %v1112, 7
        %v1114 = vsub.s32 %v1111, %v1113
        %v1115 = vrot.slane %v1107, %v1114
        %v1117 = vunpack.c.l.s4 1934713408
        %v1118 = vunpack.c.0.s8 %v1117
        %v1119 = vlaneseq
        %v1120 = vshrl.u32 %v1119, 7
        %v1121 = vsub.s32 %v1118, %v1120
        %v1122 = vrot.slane %v1108, %v1121
        %v1123 = vcombine.high %v1115, 0
        %v1124 = vcombine.high %v1122, 0
        %v1127 = vunpack.c.l.s4 1983009808
        %v1128 = vunpack.c.0.s8 %v1127
        %v1129 = vlaneseq
        %v1130 = vshrl.u32 %v1129, 7
        %v1131 = vsub.s32 %v1128, %v1130
        %v1132 = vrot.slane %v1087, %v1131
        %v1135 = vunpack.c.l.s4 1983009808
        %v1136 = vunpack.c.0.s8 %v1135
        %v1137 = vlaneseq
        %v1138 = vshrl.u32 %v1137, 7
        %v1139 = vsub.s32 %v1136, %v1138
        %v1140 = vrot.slane %v1091, %v1139
        %v1141 = vcombine.low %v1132, %v1140
        %v1142 = vcombine.high %v1132, %v1140
        %v1144 = vunpack.c.l.s4 1934713408
        %v1145 = vunpack.c.0.s8 %v1144
        %v1146 = vlaneseq
        %v1147 = vshrl.u32 %v1146, 7
        %v1148 = vsub.s32 %v1145, %v1147
        %v1149 = vrot.slane %v1141, %v1148
        %v1151 = vunpack.c.l.s4 1934713408
        %v1152 = vunpack.c.0.s8 %v1151
        %v1153 = vlaneseq
        %v1154 = vshrl.u32 %v1153, 7
        %v1155 = vsub.s32 %v1152, %v1154
        %v1156 = vrot.slane %v1142, %v1155
        %v1157 = vcombine.high %v1149, 0
        %v1158 = vcombine.high %v1156, 0
        %v1161 = vpack.i.b16 %v1149, %v1115
        %v1163 = vshrl.u32 %v1115, 16
        %v1164 = vshrl.u32 %v1149, 16
        %v1165 = vpack.i.b16 %v1164, %v1163
        %v1169 = vpack.i.b16 %v1157, %v1123
        %v1171 = vshrl.u32 %v1123, 16
        %v1172 = vshrl.u32 %v1157, 16
        %v1173 = vpack.i.b16 %v1172, %v1171
        %v1177 = vpack.i.b16 %v1156, %v1122
        %v1179 = vshrl.u32 %v1122, 16
        %v1180 = vshrl.u32 %v1156, 16
        %v1181 = vpack.i.b16 %v1180, %v1179
        %v1185 = vpack.i.b16 %v1158, %v1124
        %v1187 = vshrl.u32 %v1124, 16
        %v1188 = vshrl.u32 %v1158, 16
        %v1189 = vpack.i.b16 %v1188, %v1187
        %v1191 = vcombine.low %v1161, %v1177
        %v1193 = vunpack.c.l.s4 1983009808
        %v1194 = vunpack.c.0.s8 %v1193
        %v1195 = vlaneseq
        %v1196 = vshrl.u32 %v1195, 7
        %v1197 = vsub.s32 %v1194, %v1196
        %v1198 = vrot.slane %v1191, %v1197
        %v1199 = vcombine.low %v1169, %v1185
        %v1201 = vunpack.c.l.s4 1983009808
        %v1202 = vunpack.c.0.s8 %v1201
        %v1203 = vlaneseq
        %v1204 = vshrl.u32 %v1203, 7
        %v1205 = vsub.s32 %v1202, %v1204
        %v1206 = vrot.slane %v1199, %v1205
        %v1207 = vcombine.low %v1198, %v1206
        %v1209 = vunpack.c.l.s4 1934713408
        %v1210 = vunpack.c.0.s8 %v1209
        %v1211 = vlaneseq
        %v1212 = vshrl.u32 %v1211, 7
        %v1213 = vsub.s32 %v1210, %v1212
        %v1214 = vrot.slane %v1207, %v1213
        %v1215 = vcombine.high %v1214, 0
        %v1216 = vcombine.low %v1165, %v1181
        %v1218 = vunpack.c.l.s4 1983009808
        %v1219 = vunpack.c.0.s8 %v1218
        %v1220 = vlaneseq
        %v1221 = vshrl.u32 %v1220, 7
        %v1222 = vsub.s32 %v1219, %v1221
        %v1223 = vrot.slane %v1216, %v1222
        %v1224 = vcombine.low %v1173, %v1189
        %v1226 = vunpack.c.l.s4 1983009808
        %v1227 = vunpack.c.0.s8 %v1226
        %v1228 = vlaneseq
        %v1229 = vshrl.u32 %v1228, 7
        %v1230 = vsub.s32 %v1227, %v1229
        %v1231 = vrot.slane %v1224, %v1230
        %v1232 = vcombine.low %v1223, %v1231
        %v1234 = vunpack.c.l.s4 1934713408
        %v1235 = vunpack.c.0.s8 %v1234
        %v1236 = vlaneseq
        %v1237 = vshrl.u32 %v1236, 7
        %v1238 = vsub.s32 %v1235, %v1237
        %v1239 = vrot.slane %v1232, %v1238
        %v1240 = vcombine.high %v1239, 0
        %v1243 = vpack.i.b16 %v1239, %v1214
        %v1244 = vshrl.u32 %v1214, 16
        %v1245 = vshrl.u32 %v1239, 16
        %v1246 = vpack.i.b16 %v1245, %v1244
        %v1249 = vpack.i.b16 %v1240, %v1215
        %v1250 = vshrl.u32 %v1215, 16
        %v1251 = vshrl.u32 %v1240, 16
        %v1252 = vpack.i.b16 %v1251, %v1250
        %v1253 = vld [vmem:[#allocation5] sm:$0xf]
        %v1254 = vld [vmem:[#allocation5 + $0x4] sm:$0xf]
        %v1255 = vld [vmem:[#allocation5 + $0x8] sm:$0xf]
        %v1256 = vld [vmem:[#allocation5 + $0xc] sm:$0xf]
        %v1257 = vld [vmem:[#allocation5 + $0x10] sm:$0xf]
        %v1258 = vld [vmem:[#allocation5 + $0x14] sm:$0xf]
        %v1259 = vld [vmem:[#allocation5 + $0x18] sm:$0xf]
        %v1260 = vld [vmem:[#allocation5 + $0x1c] sm:$0xf]
        %v1261 = vld [vmem:[#allocation5 + $0x20] sm:$0xf]
        %v1262 = vld [vmem:[#allocation5 + $0x24] sm:$0xf]
        %v1263 = vld [vmem:[#allocation5 + $0x28] sm:$0xf]
        %v1264 = vld [vmem:[#allocation5 + $0x2c] sm:$0xf]
        %v1265 = vld [vmem:[#allocation5 + $0x30] sm:$0xf]
        %v1266 = vld [vmem:[#allocation5 + $0x34] sm:$0xf]
        %v1267 = vld [vmem:[#allocation5 + $0x38] sm:$0xf]
        %v1268 = vld [vmem:[#allocation5 + $0x3c] sm:$0xf]
        %v1285 = vunpack.c.l.b16 %v1253
        %v1286 = vunpack.c.l.b16 %v1254
        %v1287 = vunpack.c.l.b16 %v1255
        %v1288 = vunpack.c.l.b16 %v1256
        %v1289 = vunpack.c.l.b16 %v1257
        %v1290 = vunpack.c.l.b16 %v1258
        %v1291 = vunpack.c.l.b16 %v1259
        %v1292 = vunpack.c.l.b16 %v1260
        %v1293 = vunpack.c.l.b16 %v1261
        %v1294 = vunpack.c.l.b16 %v1262
        %v1295 = vunpack.c.l.b16 %v1263
        %v1296 = vunpack.c.l.b16 %v1264
        %v1297 = vunpack.c.l.b16 %v1265
        %v1298 = vunpack.c.l.b16 %v1266
        %v1299 = vunpack.c.l.b16 %v1267
        %v1300 = vunpack.c.l.b16 %v1268
        %v1301 = vpack.c.b16 %v1286, %v1285
        %v1302 = vpack.c.b16 %v1288, %v1287
        %v1303 = vpack.c.b16 %v1290, %v1289
        %v1304 = vpack.c.b16 %v1292, %v1291
        %v1305 = vpack.c.b16 %v1294, %v1293
        %v1306 = vpack.c.b16 %v1296, %v1295
        %v1307 = vpack.c.b16 %v1298, %v1297
        %v1308 = vpack.c.b16 %v1300, %v1299
        %1317 = vmatprep.subr.bf16.mxu0 0
        %1318 = vmatpush1.bf16.msra.mxu0 %v1301
        %1319 = vmatprep.subr.bf16.mxu0 0
        %1320 = vmatpush1.bf16.msra.mxu0 %v1302
        %1321 = vmatprep.subr.bf16.mxu0 0
        %1322 = vmatpush1.bf16.msra.mxu0 %v1303
        %1323 = vmatprep.subr.bf16.mxu0 0
        %1324 = vmatpush1.bf16.msra.mxu0 %v1304
        %1325 = vmatprep.subr.bf16.mxu0 0
        %1326 = vmatpush1.bf16.msra.mxu0 %v1305
        %1327 = vmatprep.subr.bf16.mxu0 0
        %1328 = vmatpush1.bf16.msra.mxu0 %v1306
        %1329 = vmatprep.subr.bf16.mxu0 0
        %1330 = vmatpush1.bf16.msra.mxu0 %v1307
        %1331 = vmatprep.subr.bf16.mxu0 0
        %1332 = vmatpush1.bf16.msra.mxu0 %v1308
        %1333 = vmatprep.subr.bf16.mxu0 0
        %1334 = vmatpush1.bf16.msra.mxu0 0
        %1335 = vmatprep.subr.bf16.mxu0 0
        %1336 = vmatpush1.bf16.msra.mxu0 0
        %1337 = vmatprep.subr.bf16.mxu0 0
        %1338 = vmatpush1.bf16.msra.mxu0 0
        %1339 = vmatprep.subr.bf16.mxu0 0
        %1340 = vmatpush1.bf16.msra.mxu0 0
        %1341 = vmatprep.subr.bf16.mxu0 0
        %1342 = vmatpush1.bf16.msra.mxu0 0
        %1343 = vmatprep.subr.bf16.mxu0 0
        %1344 = vmatpush1.bf16.msra.mxu0 0
        %1345 = vmatprep.subr.bf16.mxu0 0
        %1346 = vmatpush1.bf16.msra.mxu0 0
        %1347 = vmatprep.subr.bf16.mxu0 0
        %1348 = vmatpush1.bf16.msra.mxu0 0
        %1349 = vmatprep.mubr.bf16.mxu0 0
        %1350 = vmatmul.mubr.bf16.gmra.mrb[0].mxu0 %v706
        %v1351 = vpop.f32.mrb[0].mxu0
        %v1352 = vadd.f32 0.0, %v1351
        %v1353 = vpop.f32.mrb[0].mxu0
        %v1354 = vpop.f32.mrb[0].mxu0
        %v1355 = vpop.f32.mrb[0].mxu0
        %1356 = vdwg.mxu0
        %v1357 = vpack.c.bf16 %v1352, %v1352
        %1359 = vrot.lane.b32.xlu0 %v1357, 96
        %v1360 = vpop.permute.xlu0 %1359
        %1361 = vrot.lane.b32.xlu0 %v1357, 64
        %v1362 = vpop.permute.xlu0 %1361
        %1363 = vrot.lane.b32.xlu0 %v1357, 32
        %v1364 = vpop.permute.xlu0 %1363
        %v1366 = vunpack.c.l.s4 1983009808
        %v1367 = vunpack.c.0.s8 %v1366
        %v1368 = vlaneseq
        %v1369 = vshrl.u32 %v1368, 7
        %v1370 = vsub.s32 %v1367, %v1369
        %v1371 = vrot.slane %v1357, %v1370
        %v1374 = vunpack.c.l.s4 1983009808
        %v1375 = vunpack.c.0.s8 %v1374
        %v1376 = vlaneseq
        %v1377 = vshrl.u32 %v1376, 7
        %v1378 = vsub.s32 %v1375, %v1377
        %v1379 = vrot.slane %v1362, %v1378
        %v1380 = vcombine.low %v1371, %v1379
        %v1381 = vcombine.high %v1371, %v1379
        %v1383 = vunpack.c.l.s4 1934713408
        %v1384 = vunpack.c.0.s8 %v1383
        %v1385 = vlaneseq
        %v1386 = vshrl.u32 %v1385, 7
        %v1387 = vsub.s32 %v1384, %v1386
        %v1388 = vrot.slane %v1380, %v1387
        %v1390 = vunpack.c.l.s4 1934713408
        %v1391 = vunpack.c.0.s8 %v1390
        %v1392 = vlaneseq
        %v1393 = vshrl.u32 %v1392, 7
        %v1394 = vsub.s32 %v1391, %v1393
        %v1395 = vrot.slane %v1381, %v1394
        %v1396 = vcombine.high %v1388, 0
        %v1397 = vcombine.high %v1395, 0
        %v1400 = vunpack.c.l.s4 1983009808
        %v1401 = vunpack.c.0.s8 %v1400
        %v1402 = vlaneseq
        %v1403 = vshrl.u32 %v1402, 7
        %v1404 = vsub.s32 %v1401, %v1403
        %v1405 = vrot.slane %v1360, %v1404
        %v1408 = vunpack.c.l.s4 1983009808
        %v1409 = vunpack.c.0.s8 %v1408
        %v1410 = vlaneseq
        %v1411 = vshrl.u32 %v1410, 7
        %v1412 = vsub.s32 %v1409, %v1411
        %v1413 = vrot.slane %v1364, %v1412
        %v1414 = vcombine.low %v1405, %v1413
        %v1415 = vcombine.high %v1405, %v1413
        %v1417 = vunpack.c.l.s4 1934713408
        %v1418 = vunpack.c.0.s8 %v1417
        %v1419 = vlaneseq
        %v1420 = vshrl.u32 %v1419, 7
        %v1421 = vsub.s32 %v1418, %v1420
        %v1422 = vrot.slane %v1414, %v1421
        %v1424 = vunpack.c.l.s4 1934713408
        %v1425 = vunpack.c.0.s8 %v1424
        %v1426 = vlaneseq
        %v1427 = vshrl.u32 %v1426, 7
        %v1428 = vsub.s32 %v1425, %v1427
        %v1429 = vrot.slane %v1415, %v1428
        %v1430 = vcombine.high %v1422, 0
        %v1431 = vcombine.high %v1429, 0
        %v1434 = vpack.i.b16 %v1422, %v1388
        %v1436 = vshrl.u32 %v1388, 16
        %v1437 = vshrl.u32 %v1422, 16
        %v1438 = vpack.i.b16 %v1437, %v1436
        %v1442 = vpack.i.b16 %v1430, %v1396
        %v1444 = vshrl.u32 %v1396, 16
        %v1445 = vshrl.u32 %v1430, 16
        %v1446 = vpack.i.b16 %v1445, %v1444
        %v1450 = vpack.i.b16 %v1429, %v1395
        %v1452 = vshrl.u32 %v1395, 16
        %v1453 = vshrl.u32 %v1429, 16
        %v1454 = vpack.i.b16 %v1453, %v1452
        %v1458 = vpack.i.b16 %v1431, %v1397
        %v1460 = vshrl.u32 %v1397, 16
        %v1461 = vshrl.u32 %v1431, 16
        %v1462 = vpack.i.b16 %v1461, %v1460
        %v1464 = vcombine.low %v1434, %v1450
        %v1466 = vunpack.c.l.s4 1983009808
        %v1467 = vunpack.c.0.s8 %v1466
        %v1468 = vlaneseq
        %v1469 = vshrl.u32 %v1468, 7
        %v1470 = vsub.s32 %v1467, %v1469
        %v1471 = vrot.slane %v1464, %v1470
        %v1472 = vcombine.low %v1442, %v1458
        %v1474 = vunpack.c.l.s4 1983009808
        %v1475 = vunpack.c.0.s8 %v1474
        %v1476 = vlaneseq
        %v1477 = vshrl.u32 %v1476, 7
        %v1478 = vsub.s32 %v1475, %v1477
        %v1479 = vrot.slane %v1472, %v1478
        %v1480 = vcombine.low %v1471, %v1479
        %v1482 = vunpack.c.l.s4 1934713408
        %v1483 = vunpack.c.0.s8 %v1482
        %v1484 = vlaneseq
        %v1485 = vshrl.u32 %v1484, 7
        %v1486 = vsub.s32 %v1483, %v1485
        %v1487 = vrot.slane %v1480, %v1486
        %v1488 = vcombine.high %v1487, 0
        %v1489 = vcombine.low %v1438, %v1454
        %v1491 = vunpack.c.l.s4 1983009808
        %v1492 = vunpack.c.0.s8 %v1491
        %v1493 = vlaneseq
        %v1494 = vshrl.u32 %v1493, 7
        %v1495 = vsub.s32 %v1492, %v1494
        %v1496 = vrot.slane %v1489, %v1495
        %v1497 = vcombine.low %v1446, %v1462
        %v1499 = vunpack.c.l.s4 1983009808
        %v1500 = vunpack.c.0.s8 %v1499
        %v1501 = vlaneseq
        %v1502 = vshrl.u32 %v1501, 7
        %v1503 = vsub.s32 %v1500, %v1502
        %v1504 = vrot.slane %v1497, %v1503
        %v1505 = vcombine.low %v1496, %v1504
        %v1507 = vunpack.c.l.s4 1934713408
        %v1508 = vunpack.c.0.s8 %v1507
        %v1509 = vlaneseq
        %v1510 = vshrl.u32 %v1509, 7
        %v1511 = vsub.s32 %v1508, %v1510
        %v1512 = vrot.slane %v1505, %v1511
        %v1513 = vcombine.high %v1512, 0
        %v1516 = vpack.i.b16 %v1512, %v1487
        %v1517 = vshrl.u32 %v1487, 16
        %v1518 = vshrl.u32 %v1512, 16
        %v1519 = vpack.i.b16 %v1518, %v1517
        %v1522 = vpack.i.b16 %v1513, %v1488
        %v1523 = vshrl.u32 %v1488, 16
        %v1524 = vshrl.u32 %v1513, 16
        %v1525 = vpack.i.b16 %v1524, %v1523
        %v1526 = vld [vmem:[%s702] sm:$0x1]
        %v1528 = vlaneseq
        %v1529 = vshrl.u32 %v1528, 7
        %v1530 = vsub.s32 0, %v1529
        %v1531 = vrot.slane %v1526, %v1530
        %vm1533 = vcmask 261120
        %v1535 = vsel %vm1533, %v970, 0
        %v1538 = vsel %vm1533, %v1243, 0
        %1540 = vmatprep.subr.bf16.mxu0 0
        %1541 = vmatpush1.bf16.xpose.msra.mxu0 %v1538
        %1542 = vmatprep.subr.bf16.mxu0 0
        %1543 = vmatpush1.bf16.xpose.msra.mxu0 0
        %1544 = vmatprep.subr.bf16.mxu0 0
        %1545 = vmatpush1.bf16.xpose.msra.mxu0 0
        %1546 = vmatprep.subr.bf16.mxu0 0
        %1547 = vmatpush1.bf16.xpose.msra.mxu0 0
        %1548 = vmatprep.subr.bf16.mxu0 0
        %1549 = vmatpush1.bf16.xpose.msra.mxu0 0
        %1550 = vmatprep.subr.bf16.mxu0 0
        %1551 = vmatpush1.bf16.xpose.msra.mxu0 0
        %1552 = vmatprep.subr.bf16.mxu0 0
        %1553 = vmatpush1.bf16.xpose.msra.mxu0 0
        %1554 = vmatprep.subr.bf16.mxu0 0
        %1555 = vmatpush1.bf16.xpose.msra.mxu0 0
        %1556 = vmatprep.subr.bf16.mxu0 0
        %1557 = vmatpush1.bf16.xpose.msra.mxu0 0
        %1558 = vmatprep.subr.bf16.mxu0 0
        %1559 = vmatpush1.bf16.xpose.msra.mxu0 0
        %1560 = vmatprep.subr.bf16.mxu0 0
        %1561 = vmatpush1.bf16.xpose.msra.mxu0 0
        %1562 = vmatprep.subr.bf16.mxu0 0
        %1563 = vmatpush1.bf16.xpose.msra.mxu0 0
        %1564 = vmatprep.subr.bf16.mxu0 0
        %1565 = vmatpush1.bf16.xpose.msra.mxu0 0
        %1566 = vmatprep.subr.bf16.mxu0 0
        %1567 = vmatpush1.bf16.xpose.msra.mxu0 0
        %1568 = vmatprep.subr.bf16.mxu0 0
        %1569 = vmatpush1.bf16.xpose.msra.mxu0 0
        %1570 = vmatprep.subr.bf16.mxu0 0
        %1571 = vmatpush1.bf16.xpose.msra.mxu0 0
        %1572 = vmatprep.mubr.bf16.mxu0 0
        %1573 = vmatmul.mubr.bf16.gmra.mrb[0].mxu0 %v1535
        %v1574 = vpop.f32.mrb[0].mxu0
        %v1575 = vadd.f32 %v1531, %v1574
        %v1576 = vpop.f32.mrb[0].mxu0
        %v1577 = vpop.f32.mrb[0].mxu0
        %v1578 = vpop.f32.mrb[0].mxu0
        %1579 = vdwg.mxu0
        %v1581 = vsel %vm1533, %v973, 0
        %v1584 = vsel %vm1533, %v1246, 0
        %1586 = vmatprep.subr.bf16.mxu0 0
        %1587 = vmatpush1.bf16.xpose.msra.mxu0 %v1584
        %1588 = vmatprep.subr.bf16.mxu0 0
        %1589 = vmatpush1.bf16.xpose.msra.mxu0 0
        %1590 = vmatprep.subr.bf16.mxu0 0
        %1591 = vmatpush1.bf16.xpose.msra.mxu0 0
        %1592 = vmatprep.subr.bf16.mxu0 0
        %1593 = vmatpush1.bf16.xpose.msra.mxu0 0
        %1594 = vmatprep.subr.bf16.mxu0 0
        %1595 = vmatpush1.bf16.xpose.msra.mxu0 0
        %1596 = vmatprep.subr.bf16.mxu0 0
        %1597 = vmatpush1.bf16.xpose.msra.mxu0 0
        %1598 = vmatprep.subr.bf16.mxu0 0
        %1599 = vmatpush1.bf16.xpose.msra.mxu0 0
        %1600 = vmatprep.subr.bf16.mxu0 0
        %1601 = vmatpush1.bf16.xpose.msra.mxu0 0
        %1602 = vmatprep.subr.bf16.mxu0 0
        %1603 = vmatpush1.bf16.xpose.msra.mxu0 0
        %1604 = vmatprep.subr.bf16.mxu0 0
        %1605 = vmatpush1.bf16.xpose.msra.mxu0 0
        %1606 = vmatprep.subr.bf16.mxu0 0
        %1607 = vmatpush1.bf16.xpose.msra.mxu0 0
        %1608 = vmatprep.subr.bf16.mxu0 0
        %1609 = vmatpush1.bf16.xpose.msra.mxu0 0
        %1610 = vmatprep.subr.bf16.mxu0 0
        %1611 = vmatpush1.bf16.xpose.msra.mxu0 0
        %1612 = vmatprep.subr.bf16.mxu0 0
        %1613 = vmatpush1.bf16.xpose.msra.mxu0 0
        %1614 = vmatprep.subr.bf16.mxu0 0
        %1615 = vmatpush1.bf16.xpose.msra.mxu0 0
        %1616 = vmatprep.subr.bf16.mxu0 0
        %1617 = vmatpush1.bf16.xpose.msra.mxu0 0
        %1618 = vmatprep.mubr.bf16.mxu0 0
        %1619 = vmatmul.mubr.bf16.gmra.mrb[0].mxu0 %v1581
        %v1620 = vpop.f32.mrb[0].mxu0
        %v1621 = vadd.f32 %v1531, %v1620
        %v1622 = vpop.f32.mrb[0].mxu0
        %v1623 = vpop.f32.mrb[0].mxu0
        %v1624 = vpop.f32.mrb[0].mxu0
        %1625 = vdwg.mxu0
        %v1627 = vsel %vm1533, %v976, 0
        %v1630 = vsel %vm1533, %v1249, 0
        %1632 = vmatprep.subr.bf16.mxu0 0
        %1633 = vmatpush1.bf16.xpose.msra.mxu0 %v1630
        %1634 = vmatprep.subr.bf16.mxu0 0
        %1635 = vmatpush1.bf16.xpose.msra.mxu0 0
        %1636 = vmatprep.subr.bf16.mxu0 0
        %1637 = vmatpush1.bf16.xpose.msra.mxu0 0
        %1638 = vmatprep.subr.bf16.mxu0 0
        %1639 = vmatpush1.bf16.xpose.msra.mxu0 0
        %1640 = vmatprep.subr.bf16.mxu0 0
        %1641 = vmatpush1.bf16.xpose.msra.mxu0 0
        %1642 = vmatprep.subr.bf16.mxu0 0
        %1643 = vmatpush1.bf16.xpose.msra.mxu0 0
        %1644 = vmatprep.subr.bf16.mxu0 0
        %1645 = vmatpush1.bf16.xpose.msra.mxu0 0
        %1646 = vmatprep.subr.bf16.mxu0 0
        %1647 = vmatpush1.bf16.xpose.msra.mxu0 0
        %1648 = vmatprep.subr.bf16.mxu0 0
        %1649 = vmatpush1.bf16.xpose.msra.mxu0 0
        %1650 = vmatprep.subr.bf16.mxu0 0
        %1651 = vmatpush1.bf16.xpose.msra.mxu0 0
        %1652 = vmatprep.subr.bf16.mxu0 0
        %1653 = vmatpush1.bf16.xpose.msra.mxu0 0
        %1654 = vmatprep.subr.bf16.mxu0 0
        %1655 = vmatpush1.bf16.xpose.msra.mxu0 0
        %1656 = vmatprep.subr.bf16.mxu0 0
        %1657 = vmatpush1.bf16.xpose.msra.mxu0 0
        %1658 = vmatprep.subr.bf16.mxu0 0
        %1659 = vmatpush1.bf16.xpose.msra.mxu0 0
        %1660 = vmatprep.subr.bf16.mxu0 0
        %1661 = vmatpush1.bf16.xpose.msra.mxu0 0
        %1662 = vmatprep.subr.bf16.mxu0 0
        %1663 = vmatpush1.bf16.xpose.msra.mxu0 0
        %1664 = vmatprep.mubr.bf16.mxu0 0
        %1665 = vmatmul.mubr.bf16.gmra.mrb[0].mxu0 %v1627
        %v1666 = vpop.f32.mrb[0].mxu0
        %v1667 = vadd.f32 %v1531, %v1666
        %v1668 = vpop.f32.mrb[0].mxu0
        %v1669 = vpop.f32.mrb[0].mxu0
        %v1670 = vpop.f32.mrb[0].mxu0
        %1671 = vdwg.mxu0
        %v1673 = vsel %vm1533, %v979, 0
        %v1676 = vsel %vm1533, %v1252, 0
        %1678 = vmatprep.subr.bf16.mxu0 0
        %1679 = vmatpush1.bf16.xpose.msra.mxu0 %v1676
        %1680 = vmatprep.subr.bf16.mxu0 0
        %1681 = vmatpush1.bf16.xpose.msra.mxu0 0
        %1682 = vmatprep.subr.bf16.mxu0 0
        %1683 = vmatpush1.bf16.xpose.msra.mxu0 0
        %1684 = vmatprep.subr.bf16.mxu0 0
        %1685 = vmatpush1.bf16.xpose.msra.mxu0 0
        %1686 = vmatprep.subr.bf16.mxu0 0
        %1687 = vmatpush1.bf16.xpose.msra.mxu0 0
        %1688 = vmatprep.subr.bf16.mxu0 0
        %1689 = vmatpush1.bf16.xpose.msra.mxu0 0
        %1690 = vmatprep.subr.bf16.mxu0 0
        %1691 = vmatpush1.bf16.xpose.msra.mxu0 0
        %1692 = vmatprep.subr.bf16.mxu0 0
        %1693 = vmatpush1.bf16.xpose.msra.mxu0 0
        %1694 = vmatprep.subr.bf16.mxu0 0
        %1695 = vmatpush1.bf16.xpose.msra.mxu0 0
        %1696 = vmatprep.subr.bf16.mxu0 0
        %1697 = vmatpush1.bf16.xpose.msra.mxu0 0
        %1698 = vmatprep.subr.bf16.mxu0 0
        %1699 = vmatpush1.bf16.xpose.msra.mxu0 0
        %1700 = vmatprep.subr.bf16.mxu0 0
        %1701 = vmatpush1.bf16.xpose.msra.mxu0 0
        %1702 = vmatprep.subr.bf16.mxu0 0
        %1703 = vmatpush1.bf16.xpose.msra.mxu0 0
        %1704 = vmatprep.subr.bf16.mxu0 0
        %1705 = vmatpush1.bf16.xpose.msra.mxu0 0
        %1706 = vmatprep.subr.bf16.mxu0 0
        %1707 = vmatpush1.bf16.xpose.msra.mxu0 0
        %1708 = vmatprep.subr.bf16.mxu0 0
        %1709 = vmatpush1.bf16.xpose.msra.mxu0 0
        %1710 = vmatprep.mubr.bf16.mxu0 0
        %1711 = vmatmul.mubr.bf16.gmra.mrb[0].mxu0 %v1673
        %v1712 = vpop.f32.mrb[0].mxu0
        %v1713 = vadd.f32 %v1531, %v1712
        %v1714 = vpop.f32.mrb[0].mxu0
        %v1715 = vpop.f32.mrb[0].mxu0
        %v1716 = vpop.f32.mrb[0].mxu0
        %1717 = vdwg.mxu0
        %v1718 = vmul.f32 %v1575, 0.17677669
        %v1719 = vmul.f32 %v1621, 0.17677669
        %v1720 = vmul.f32 %v1667, 0.17677669
        %v1721 = vmul.f32 %v1713, 0.17677669
        %vm1722 = vcmask 64512
        %v1723 = vsel %vm1722, %v1718, -inf
        %1724 = vmax.xlane.f32.xlu0 %v1723
        %v1725 = vpop.xlane.xlu0 %1724
        %v1726 = vsel %vm1722, %v1719, -inf
        %1727 = vmax.xlane.f32.xlu0 %v1726
        %v1728 = vpop.xlane.xlu0 %1727
        %v1729 = vsel %vm1722, %v1720, -inf
        %1730 = vmax.xlane.f32.xlu0 %v1729
        %v1731 = vpop.xlane.xlu0 %1730
        %v1732 = vsel %vm1722, %v1721, -inf
        %1733 = vmax.xlane.f32.xlu0 %v1732
        %v1734 = vpop.xlane.xlu0 %1733
        %v1735 = vsub.f32 %v1718, %v1725
        %v1736 = vsub.f32 %v1719, %v1728
        %v1737 = vsub.f32 %v1720, %v1731
        %v1738 = vsub.f32 %v1721, %v1734
        %v1739 = vmul.f32 %v1735, 1.442695
        %v1740 = vpow.pop %v1739
        %v1741 = vmul.f32 %v1736, 1.442695
        %v1742 = vpow.pop %v1741
        %v1743 = vmul.f32 %v1737, 1.442695
        %v1744 = vpow.pop %v1743
        %v1745 = vmul.f32 %v1738, 1.442695
        %v1746 = vpow.pop %v1745
        %v1747 = vsel %vm1722, %v1740, 0.0
        %1748 = vadd.xlane.f32.xlu0 %v1747
        %v1749 = vpop.xlane.xlu0 %1748
        %v1750 = vsel %vm1722, %v1742, 0.0
        %1751 = vadd.xlane.f32.xlu0 %v1750
        %v1752 = vpop.xlane.xlu0 %1751
        %v1753 = vsel %vm1722, %v1744, 0.0
        %1754 = vadd.xlane.f32.xlu0 %v1753
        %v1755 = vpop.xlane.xlu0 %1754
        %v1756 = vsel %vm1722, %v1746, 0.0
        %1757 = vadd.xlane.f32.xlu0 %v1756
        %v1758 = vpop.xlane.xlu0 %1757
        %v1759 = vrcp.pop %v1749
        %v1760 = vrcp.pop %v1752
        %v1761 = vrcp.pop %v1755
        %v1762 = vrcp.pop %v1758
        %v1763 = vmul.f32 %v1740, %v1759
        %v1764 = vmul.f32 %v1742, %v1760
        %v1765 = vmul.f32 %v1744, %v1761
        %v1766 = vmul.f32 %v1746, %v1762
        %v1767 = vpack.c.bf16 %v1763, %v1763
        %v1768 = vpack.c.bf16 %v1764, %v1764
        %v1769 = vpack.c.bf16 %v1765, %v1765
        %v1770 = vpack.c.bf16 %v1766, %v1766
        %v1772 = vsel %vm1722, %v1767, 0
        %vm1774 = vcmask 1043456
        %v1776 = vsel %vm1774, %v1516, 0
        %1778 = vmatprep.subr.bf16.mxu0 0
        %1779 = vmatpush1.bf16.msra.mxu0 %v1776
        %1780 = vmatprep.subr.bf16.mxu0 0
        %1781 = vmatpush1.bf16.msra.mxu0 0
        %1782 = vmatprep.subr.bf16.mxu0 0
        %1783 = vmatpush1.bf16.msra.mxu0 0
        %1784 = vmatprep.subr.bf16.mxu0 0
        %1785 = vmatpush1.bf16.msra.mxu0 0
        %1786 = vmatprep.subr.bf16.mxu0 0
        %1787 = vmatpush1.bf16.msra.mxu0 0
        %1788 = vmatprep.subr.bf16.mxu0 0
        %1789 = vmatpush1.bf16.msra.mxu0 0
        %1790 = vmatprep.subr.bf16.mxu0 0
        %1791 = vmatpush1.bf16.msra.mxu0 0
        %1792 = vmatprep.subr.bf16.mxu0 0
        %1793 = vmatpush1.bf16.msra.mxu0 0
        %1794 = vmatprep.subr.bf16.mxu0 0
        %1795 = vmatpush1.bf16.msra.mxu0 0
        %1796 = vmatprep.subr.bf16.mxu0 0
        %1797 = vmatpush1.bf16.msra.mxu0 0
        %1798 = vmatprep.subr.bf16.mxu0 0
        %1799 = vmatpush1.bf16.msra.mxu0 0
        %1800 = vmatprep.subr.bf16.mxu0 0
        %1801 = vmatpush1.bf16.msra.mxu0 0
        %1802 = vmatprep.subr.bf16.mxu0 0
        %1803 = vmatpush1.bf16.msra.mxu0 0
        %1804 = vmatprep.subr.bf16.mxu0 0
        %1805 = vmatpush1.bf16.msra.mxu0 0
        %1806 = vmatprep.subr.bf16.mxu0 0
        %1807 = vmatpush1.bf16.msra.mxu0 0
        %1808 = vmatprep.subr.bf16.mxu0 0
        %1809 = vmatpush1.bf16.msra.mxu0 0
        %1810 = vmatprep.mubr.bf16.mxu0 0
        %1811 = vmatmul.mubr.bf16.gmra.mrb[0].mxu0 %v1772
        %v1812 = vpop.f32.mrb[0].mxu0
        %v1813 = vadd.f32 0.0, %v1812
        %v1814 = vpop.f32.mrb[0].mxu0
        %v1815 = vpop.f32.mrb[0].mxu0
        %v1816 = vpop.f32.mrb[0].mxu0
        %1817 = vdwg.mxu0
        %v1819 = vsel %vm1722, %v1768, 0
        %v1822 = vsel %vm1774, %v1519, 0
        %1824 = vmatprep.subr.bf16.mxu0 0
        %1825 = vmatpush1.bf16.msra.mxu0 %v1822
        %1826 = vmatprep.subr.bf16.mxu0 0
        %1827 = vmatpush1.bf16.msra.mxu0 0
        %1828 = vmatprep.subr.bf16.mxu0 0
        %1829 = vmatpush1.bf16.msra.mxu0 0
        %1830 = vmatprep.subr.bf16.mxu0 0
        %1831 = vmatpush1.bf16.msra.mxu0 0
        %1832 = vmatprep.subr.bf16.mxu0 0
        %1833 = vmatpush1.bf16.msra.mxu0 0
        %1834 = vmatprep.subr.bf16.mxu0 0
        %1835 = vmatpush1.bf16.msra.mxu0 0
        %1836 = vmatprep.subr.bf16.mxu0 0
        %1837 = vmatpush1.bf16.msra.mxu0 0
        %1838 = vmatprep.subr.bf16.mxu0 0
        %1839 = vmatpush1.bf16.msra.mxu0 0
        %1840 = vmatprep.subr.bf16.mxu0 0
        %1841 = vmatpush1.bf16.msra.mxu0 0
        %1842 = vmatprep.subr.bf16.mxu0 0
        %1843 = vmatpush1.bf16.msra.mxu0 0
        %1844 = vmatprep.subr.bf16.mxu0 0
        %1845 = vmatpush1.bf16.msra.mxu0 0
        %1846 = vmatprep.subr.bf16.mxu0 0
        %1847 = vmatpush1.bf16.msra.mxu0 0
        %1848 = vmatprep.subr.bf16.mxu0 0
        %1849 = vmatpush1.bf16.msra.mxu0 0
        %1850 = vmatprep.subr.bf16.mxu0 0
        %1851 = vmatpush1.bf16.msra.mxu0 0
        %1852 = vmatprep.subr.bf16.mxu0 0
        %1853 = vmatpush1.bf16.msra.mxu0 0
        %1854 = vmatprep.subr.bf16.mxu0 0
        %1855 = vmatpush1.bf16.msra.mxu0 0
        %1856 = vmatprep.mubr.bf16.mxu0 0
        %1857 = vmatmul.mubr.bf16.gmra.mrb[0].mxu0 %v1819
        %v1858 = vpop.f32.mrb[0].mxu0
        %v1859 = vadd.f32 0.0, %v1858
        %v1860 = vpop.f32.mrb[0].mxu0
        %v1861 = vpop.f32.mrb[0].mxu0
        %v1862 = vpop.f32.mrb[0].mxu0
        %1863 = vdwg.mxu0
        %v1865 = vsel %vm1722, %v1769, 0
        %v1868 = vsel %vm1774, %v1522, 0
        %1870 = vmatprep.subr.bf16.mxu0 0
        %1871 = vmatpush1.bf16.msra.mxu0 %v1868
        %1872 = vmatprep.subr.bf16.mxu0 0
        %1873 = vmatpush1.bf16.msra.mxu0 0
        %1874 = vmatprep.subr.bf16.mxu0 0
        %1875 = vmatpush1.bf16.msra.mxu0 0
        %1876 = vmatprep.subr.bf16.mxu0 0
        %1877 = vmatpush1.bf16.msra.mxu0 0
        %1878 = vmatprep.subr.bf16.mxu0 0
        %1879 = vmatpush1.bf16.msra.mxu0 0
        %1880 = vmatprep.subr.bf16.mxu0 0
        %1881 = vmatpush1.bf16.msra.mxu0 0
        %1882 = vmatprep.subr.bf16.mxu0 0
        %1883 = vmatpush1.bf16.msra.mxu0 0
        %1884 = vmatprep.subr.bf16.mxu0 0
        %1885 = vmatpush1.bf16.msra.mxu0 0
        %1886 = vmatprep.subr.bf16.mxu0 0
        %1887 = vmatpush1.bf16.msra.mxu0 0
        %1888 = vmatprep.subr.bf16.mxu0 0
        %1889 = vmatpush1.bf16.msra.mxu0 0
        %1890 = vmatprep.subr.bf16.mxu0 0
        %1891 = vmatpush1.bf16.msra.mxu0 0
        %1892 = vmatprep.subr.bf16.mxu0 0
        %1893 = vmatpush1.bf16.msra.mxu0 0
        %1894 = vmatprep.subr.bf16.mxu0 0
        %1895 = vmatpush1.bf16.msra.mxu0 0
        %1896 = vmatprep.subr.bf16.mxu0 0
        %1897 = vmatpush1.bf16.msra.mxu0 0
        %1898 = vmatprep.subr.bf16.mxu0 0
        %1899 = vmatpush1.bf16.msra.mxu0 0
        %1900 = vmatprep.subr.bf16.mxu0 0
        %1901 = vmatpush1.bf16.msra.mxu0 0
        %1902 = vmatprep.mubr.bf16.mxu0 0
        %1903 = vmatmul.mubr.bf16.gmra.mrb[0].mxu0 %v1865
        %v1904 = vpop.f32.mrb[0].mxu0
        %v1905 = vadd.f32 0.0, %v1904
        %v1906 = vpop.f32.mrb[0].mxu0
        %v1907 = vpop.f32.mrb[0].mxu0
        %v1908 = vpop.f32.mrb[0].mxu0
        %1909 = vdwg.mxu0
        %v1911 = vsel %vm1722, %v1770, 0
        %v1914 = vsel %vm1774, %v1525, 0
        %1916 = vmatprep.subr.bf16.mxu0 0
        %1917 = vmatpush1.bf16.msra.mxu0 %v1914
        %1918 = vmatprep.subr.bf16.mxu0 0
        %1919 = vmatpush1.bf16.msra.mxu0 0
        %1920 = vmatprep.subr.bf16.mxu0 0
        %1921 = vmatpush1.bf16.msra.mxu0 0
        %1922 = vmatprep.subr.bf16.mxu0 0
        %1923 = vmatpush1.bf16.msra.mxu0 0
        %1924 = vmatprep.subr.bf16.mxu0 0
        %1925 = vmatpush1.bf16.msra.mxu0 0
        %1926 = vmatprep.subr.bf16.mxu0 0
        %1927 = vmatpush1.bf16.msra.mxu0 0
        %1928 = vmatprep.subr.bf16.mxu0 0
        %1929 = vmatpush1.bf16.msra.mxu0 0
        %1930 = vmatprep.subr.bf16.mxu0 0
        %1931 = vmatpush1.bf16.msra.mxu0 0
        %1932 = vmatprep.subr.bf16.mxu0 0
        %1933 = vmatpush1.bf16.msra.mxu0 0
        %1934 = vmatprep.subr.bf16.mxu0 0
        %1935 = vmatpush1.bf16.msra.mxu0 0
        %1936 = vmatprep.subr.bf16.mxu0 0
        %1937 = vmatpush1.bf16.msra.mxu0 0
        %1938 = vmatprep.subr.bf16.mxu0 0
        %1939 = vmatpush1.bf16.msra.mxu0 0
        %1940 = vmatprep.subr.bf16.mxu0 0
        %1941 = vmatpush1.bf16.msra.mxu0 0
        %1942 = vmatprep.subr.bf16.mxu0 0
        %1943 = vmatpush1.bf16.msra.mxu0 0
        %1944 = vmatprep.subr.bf16.mxu0 0
        %1945 = vmatpush1.bf16.msra.mxu0 0
        %1946 = vmatprep.subr.bf16.mxu0 0
        %1947 = vmatpush1.bf16.msra.mxu0 0
        %1948 = vmatprep.mubr.bf16.mxu0 0
        %1949 = vmatmul.mubr.bf16.gmra.mrb[0].mxu0 %v1911
        %v1950 = vpop.f32.mrb[0].mxu0
        %v1951 = vadd.f32 0.0, %v1950
        %v1952 = vpop.f32.mrb[0].mxu0
        %v1953 = vpop.f32.mrb[0].mxu0
        %v1954 = vpop.f32.mrb[0].mxu0
        %1955 = vdwg.mxu0
        %v1956 = vpack.c.bf16 %v1813, %v1813
        %v1958 = vunpack.c.l.s4 1983009808
        %v1959 = vunpack.c.0.s8 %v1958
        %v1960 = vlaneseq
        %v1961 = vshrl.u32 %v1960, 7
        %v1962 = vsub.s32 %v1959, %v1961
        %v1963 = vrot.slane %v1956, %v1962
        %v1964 = vpack.c.bf16 %v1905, %v1905
        %v1966 = vunpack.c.l.s4 1983009808
        %v1967 = vunpack.c.0.s8 %v1966
        %v1968 = vlaneseq
        %v1969 = vshrl.u32 %v1968, 7
        %v1970 = vsub.s32 %v1967, %v1969
        %v1971 = vrot.slane %v1964, %v1970
        %v1972 = vcombine.low %v1963, %v1971
        %v1973 = vcombine.high %v1963, %v1971
        %v1975 = vunpack.c.l.s4 1934713408
        %v1976 = vunpack.c.0.s8 %v1975
        %v1977 = vlaneseq
        %v1978 = vshrl.u32 %v1977, 7
        %v1979 = vsub.s32 %v1976, %v1978
        %v1980 = vrot.slane %v1972, %v1979
        %v1982 = vunpack.c.l.s4 1934713408
        %v1983 = vunpack.c.0.s8 %v1982
        %v1984 = vlaneseq
        %v1985 = vshrl.u32 %v1984, 7
        %v1986 = vsub.s32 %v1983, %v1985
        %v1987 = vrot.slane %v1973, %v1986
        %v1988 = vcombine.high %v1980, 0
        %v1989 = vcombine.high %v1987, 0
        %v1990 = vpack.c.bf16 %v1859, %v1859
        %v1992 = vunpack.c.l.s4 1983009808
        %v1993 = vunpack.c.0.s8 %v1992
        %v1994 = vlaneseq
        %v1995 = vshrl.u32 %v1994, 7
        %v1996 = vsub.s32 %v1993, %v1995
        %v1997 = vrot.slane %v1990, %v1996
        %v1998 = vpack.c.bf16 %v1951, %v1951
        %v2000 = vunpack.c.l.s4 1983009808
        %v2001 = vunpack.c.0.s8 %v2000
        %v2002 = vlaneseq
        %v2003 = vshrl.u32 %v2002, 7
        %v2004 = vsub.s32 %v2001, %v2003
        %v2005 = vrot.slane %v1998, %v2004
        %v2006 = vcombine.low %v1997, %v2005
        %v2007 = vcombine.high %v1997, %v2005
        %v2009 = vunpack.c.l.s4 1934713408
        %v2010 = vunpack.c.0.s8 %v2009
        %v2011 = vlaneseq
        %v2012 = vshrl.u32 %v2011, 7
        %v2013 = vsub.s32 %v2010, %v2012
        %v2014 = vrot.slane %v2006, %v2013
        %v2016 = vunpack.c.l.s4 1934713408
        %v2017 = vunpack.c.0.s8 %v2016
        %v2018 = vlaneseq
        %v2019 = vshrl.u32 %v2018, 7
        %v2020 = vsub.s32 %v2017, %v2019
        %v2021 = vrot.slane %v2007, %v2020
        %v2022 = vcombine.high %v2014, 0
        %v2023 = vcombine.high %v2021, 0
        %v2026 = vpack.i.b16 %v2014, %v1980
        %v2028 = vshrl.u32 %v1980, 16
        %v2029 = vshrl.u32 %v2014, 16
        %v2030 = vpack.i.b16 %v2029, %v2028
        %v2034 = vpack.i.b16 %v2022, %v1988
        %v2036 = vshrl.u32 %v1988, 16
        %v2037 = vshrl.u32 %v2022, 16
        %v2038 = vpack.i.b16 %v2037, %v2036
        %v2042 = vpack.i.b16 %v2021, %v1987
        %v2044 = vshrl.u32 %v1987, 16
        %v2045 = vshrl.u32 %v2021, 16
        %v2046 = vpack.i.b16 %v2045, %v2044
        %v2050 = vpack.i.b16 %v2023, %v1989
        %v2052 = vshrl.u32 %v1989, 16
        %v2053 = vshrl.u32 %v2023, 16
        %v2054 = vpack.i.b16 %v2053, %v2052
        %v2056 = vcombine.low %v2026, %v2042
        %v2058 = vunpack.c.l.s4 1983009808
        %v2059 = vunpack.c.0.s8 %v2058
        %v2060 = vlaneseq
        %v2061 = vshrl.u32 %v2060, 7
        %v2062 = vsub.s32 %v2059, %v2061
        %v2063 = vrot.slane %v2056, %v2062
        %v2064 = vcombine.low %v2034, %v2050
        %v2066 = vunpack.c.l.s4 1983009808
        %v2067 = vunpack.c.0.s8 %v2066
        %v2068 = vlaneseq
        %v2069 = vshrl.u32 %v2068, 7
        %v2070 = vsub.s32 %v2067, %v2069
        %v2071 = vrot.slane %v2064, %v2070
        %v2072 = vcombine.low %v2063, %v2071
        %v2074 = vunpack.c.l.s4 1934713408
        %v2075 = vunpack.c.0.s8 %v2074
        %v2076 = vlaneseq
        %v2077 = vshrl.u32 %v2076, 7
        %v2078 = vsub.s32 %v2075, %v2077
        %v2079 = vrot.slane %v2072, %v2078
        %v2080 = vcombine.high %v2079, 0
        %v2081 = vcombine.low %v2030, %v2046
        %v2083 = vunpack.c.l.s4 1983009808
        %v2084 = vunpack.c.0.s8 %v2083
        %v2085 = vlaneseq
        %v2086 = vshrl.u32 %v2085, 7
        %v2087 = vsub.s32 %v2084, %v2086
        %v2088 = vrot.slane %v2081, %v2087
        %v2089 = vcombine.low %v2038, %v2054
        %v2091 = vunpack.c.l.s4 1983009808
        %v2092 = vunpack.c.0.s8 %v2091
        %v2093 = vlaneseq
        %v2094 = vshrl.u32 %v2093, 7
        %v2095 = vsub.s32 %v2092, %v2094
        %v2096 = vrot.slane %v2089, %v2095
        %v2097 = vcombine.low %v2088, %v2096
        %v2099 = vunpack.c.l.s4 1934713408
        %v2100 = vunpack.c.0.s8 %v2099
        %v2101 = vlaneseq
        %v2102 = vshrl.u32 %v2101, 7
        %v2103 = vsub.s32 %v2100, %v2102
        %v2104 = vrot.slane %v2097, %v2103
        %v2105 = vcombine.high %v2104, 0
        %v2108 = vpack.i.b16 %v2104, %v2079
        %v2109 = vshrl.u32 %v2079, 16
        %v2110 = vshrl.u32 %v2104, 16
        %v2111 = vpack.i.b16 %v2110, %v2109
        %v2114 = vpack.i.b16 %v2105, %v2080
        %v2115 = vshrl.u32 %v2080, 16
        %v2116 = vshrl.u32 %v2105, 16
        %v2117 = vpack.i.b16 %v2116, %v2115
        %2118 = vrot.lane.b32.xlu0 %v2111, 32
        %v2119 = vpop.permute.xlu0 %2118
        %2120 = vrot.lane.b32.xlu0 %v2114, 64
        %v2121 = vpop.permute.xlu0 %2120
        %2122 = vrot.lane.b32.xlu0 %v2117, 96
        %v2123 = vpop.permute.xlu0 %2122
        %v2126 = vsel %vm1533, %v2108, %v2119
        %vm2127 = vcmask 523264
        %v2129 = vsel %vm2127, %v2126, %v2121
        %vm2130 = vcmask 785408
        %v2132 = vsel %vm2130, %v2129, %v2123
        %v2134 = vld [vmem:[#allocation7] sm:$0xf]
        %v2135 = vld [vmem:[#allocation7 + $0x4] sm:$0xf]
        %v2136 = vld [vmem:[#allocation7 + $0x8] sm:$0xf]
        %v2137 = vld [vmem:[#allocation7 + $0xc] sm:$0xf]
        %v2138 = vld [vmem:[#allocation7 + $0x10] sm:$0xf]
        %v2139 = vld [vmem:[#allocation7 + $0x14] sm:$0xf]
        %v2140 = vld [vmem:[#allocation7 + $0x18] sm:$0xf]
        %v2141 = vld [vmem:[#allocation7 + $0x1c] sm:$0xf]
        %v2142 = vld [vmem:[#allocation7 + $0x20] sm:$0xf]
        %v2143 = vld [vmem:[#allocation7 + $0x24] sm:$0xf]
        %v2144 = vld [vmem:[#allocation7 + $0x28] sm:$0xf]
        %v2145 = vld [vmem:[#allocation7 + $0x2c] sm:$0xf]
        %v2146 = vld [vmem:[#allocation7 + $0x30] sm:$0xf]
        %v2147 = vld [vmem:[#allocation7 + $0x34] sm:$0xf]
        %v2148 = vld [vmem:[#allocation7 + $0x38] sm:$0xf]
        %v2149 = vld [vmem:[#allocation7 + $0x3c] sm:$0xf]
        %v2150 = vld [vmem:[%s8] sm:$0x1]
        %v2152 = vlaneseq
        %v2153 = vshrl.u32 %v2152, 7
        %v2154 = vsub.s32 0, %v2153
        %v2155 = vrot.slane %v2150, %v2154
        %v2173 = vunpack.c.l.b16 %v2134
        %v2174 = vunpack.c.l.b16 %v2135
        %v2175 = vunpack.c.l.b16 %v2136
        %v2176 = vunpack.c.l.b16 %v2137
        %v2177 = vunpack.c.l.b16 %v2138
        %v2178 = vunpack.c.l.b16 %v2139
        %v2179 = vunpack.c.l.b16 %v2140
        %v2180 = vunpack.c.l.b16 %v2141
        %v2181 = vunpack.c.l.b16 %v2142
        %v2182 = vunpack.c.l.b16 %v2143
        %v2183 = vunpack.c.l.b16 %v2144
        %v2184 = vunpack.c.l.b16 %v2145
        %v2185 = vunpack.c.l.b16 %v2146
        %v2186 = vunpack.c.l.b16 %v2147
        %v2187 = vunpack.c.l.b16 %v2148
        %v2188 = vunpack.c.l.b16 %v2149
        %v2189 = vpack.c.b16 %v2174, %v2173
        %v2190 = vpack.c.b16 %v2176, %v2175
        %v2191 = vpack.c.b16 %v2178, %v2177
        %v2192 = vpack.c.b16 %v2180, %v2179
        %v2193 = vpack.c.b16 %v2182, %v2181
        %v2194 = vpack.c.b16 %v2184, %v2183
        %v2195 = vpack.c.b16 %v2186, %v2185
        %v2196 = vpack.c.b16 %v2188, %v2187
        %2205 = vmatprep.subr.bf16.mxu0 0
        %2206 = vmatpush1.bf16.msra.mxu0 %v2189
        %2207 = vmatprep.subr.bf16.mxu0 0
        %2208 = vmatpush1.bf16.msra.mxu0 %v2190
        %2209 = vmatprep.subr.bf16.mxu0 0
        %2210 = vmatpush1.bf16.msra.mxu0 %v2191
        %2211 = vmatprep.subr.bf16.mxu0 0
        %2212 = vmatpush1.bf16.msra.mxu0 %v2192
        %2213 = vmatprep.subr.bf16.mxu0 0
        %2214 = vmatpush1.bf16.msra.mxu0 %v2193
        %2215 = vmatprep.subr.bf16.mxu0 0
        %2216 = vmatpush1.bf16.msra.mxu0 %v2194
        %2217 = vmatprep.subr.bf16.mxu0 0
        %2218 = vmatpush1.bf16.msra.mxu0 %v2195
        %2219 = vmatprep.subr.bf16.mxu0 0
        %2220 = vmatpush1.bf16.msra.mxu0 %v2196
        %2221 = vmatprep.subr.bf16.mxu0 0
        %2222 = vmatpush1.bf16.msra.mxu0 0
        %2223 = vmatprep.subr.bf16.mxu0 0
        %2224 = vmatpush1.bf16.msra.mxu0 0
        %2225 = vmatprep.subr.bf16.mxu0 0
        %2226 = vmatpush1.bf16.msra.mxu0 0
        %2227 = vmatprep.subr.bf16.mxu0 0
        %2228 = vmatpush1.bf16.msra.mxu0 0
        %2229 = vmatprep.subr.bf16.mxu0 0
        %2230 = vmatpush1.bf16.msra.mxu0 0
        %2231 = vmatprep.subr.bf16.mxu0 0
        %2232 = vmatpush1.bf16.msra.mxu0 0
        %2233 = vmatprep.subr.bf16.mxu0 0
        %2234 = vmatpush1.bf16.msra.mxu0 0
        %2235 = vmatprep.subr.bf16.mxu0 0
        %2236 = vmatpush1.bf16.msra.mxu0 0
        %2237 = vmatprep.mubr.bf16.mxu0 0
        %2238 = vmatmul.mubr.bf16.gmra.mrb[0].mxu0 %v2132
        %v2239 = vpop.f32.mrb[0].mxu0
        %v2240 = vadd.f32 %v2155, %v2239
        %v2241 = vpop.f32.mrb[0].mxu0
        %v2242 = vpop.f32.mrb[0].mxu0
        %v2243 = vpop.f32.mrb[0].mxu0
        %2244 = vdwg.mxu0
        %v2245 = vunpack.c.l.bf16 %v704
        %v2246 = vadd.f32 %v2240, %v2245
        %v2247 = vld [vmem:[%s9] sm:$0x1]
        %v2248 = vld [vmem:[%s10] sm:$0x1]
        %2249 = vadd.xlane.f32.xlu0 %v2246
        %v2250 = vpop.xlane.xlu0 %2249
        %v2251 = vrcp.pop 128.0
        %v2252 = vmul.f32 %v2250, %v2251
        %v2253 = vsub.f32 %v2246, %v2252
        %v2254 = vmul.f32 %v2253, %v2253
        %2255 = vadd.xlane.f32.xlu0 %v2254
        %v2256 = vpop.xlane.xlu0 %2255
        %v2257 = vmul.f32 %v2256, %v2251
        %v2258 = vadd.f32 %v2257, 1e-05
        %v2259 = vrsqrt.pop %v2258
        %v2260 = vmul.f32 %v2253, %v2259
        %v2262 = vlaneseq
        %v2263 = vshrl.u32 %v2262, 7
        %v2264 = vsub.s32 0, %v2263
        %v2265 = vrot.slane %v2247, %v2264
        %v2267 = vmul.f32 %v2260, %v2265
        %v2269 = vlaneseq
        %v2270 = vshrl.u32 %v2269, 7
        %v2271 = vsub.s32 0, %v2270
        %v2272 = vrot.slane %v2248, %v2271
        %v2274 = vadd.f32 %v2267, %v2272
        %v2275 = vpack.c.bf16 %v2274, %v2274
        %v2276 = vld [vmem:[#allocation8] sm:$0xff]
        %v2277 = vld [vmem:[#allocation8 + $0x8] sm:$0xff]
        %v2278 = vld [vmem:[#allocation8 + $0x10] sm:$0xff]
        %v2279 = vld [vmem:[#allocation8 + $0x18] sm:$0xff]
        %v2280 = vld [vmem:[#allocation8 + $0x20] sm:$0xff]
        %v2281 = vld [vmem:[#allocation8 + $0x28] sm:$0xff]
        %v2282 = vld [vmem:[#allocation8 + $0x30] sm:$0xff]
        %v2283 = vld [vmem:[#allocation8 + $0x38] sm:$0xff]
        %v2284 = vld [vmem:[#allocation8 + $0x40] sm:$0xff]
        %v2285 = vld [vmem:[#allocation8 + $0x48] sm:$0xff]
        %v2286 = vld [vmem:[#allocation8 + $0x50] sm:$0xff]
        %v2287 = vld [vmem:[#allocation8 + $0x58] sm:$0xff]
        %v2288 = vld [vmem:[#allocation8 + $0x60] sm:$0xff]
        %v2289 = vld [vmem:[#allocation8 + $0x68] sm:$0xff]
        %v2290 = vld [vmem:[#allocation8 + $0x70] sm:$0xff]
        %v2291 = vld [vmem:[#allocation8 + $0x78] sm:$0xff]
        %v2292 = vld [vmem:[#allocation8 + $0x80] sm:$0xff]
        %v2293 = vld [vmem:[#allocation8 + $0x88] sm:$0xff]
        %v2294 = vld [vmem:[#allocation8 + $0x90] sm:$0xff]
        %v2295 = vld [vmem:[#allocation8 + $0x98] sm:$0xff]
        %v2296 = vld [vmem:[#allocation8 + $0xa0] sm:$0xff]
        %v2297 = vld [vmem:[#allocation8 + $0xa8] sm:$0xff]
        %v2298 = vld [vmem:[#allocation8 + $0xb0] sm:$0xff]
        %v2299 = vld [vmem:[#allocation8 + $0xb8] sm:$0xff]
        %v2300 = vld [vmem:[#allocation8 + $0xc0] sm:$0xff]
        %v2301 = vld [vmem:[#allocation8 + $0xc8] sm:$0xff]
        %v2302 = vld [vmem:[#allocation8 + $0xd0] sm:$0xff]
        %v2303 = vld [vmem:[#allocation8 + $0xd8] sm:$0xff]
        %v2304 = vld [vmem:[#allocation8 + $0xe0] sm:$0xff]
        %v2305 = vld [vmem:[#allocation8 + $0xe8] sm:$0xff]
        %v2306 = vld [vmem:[#allocation8 + $0xf0] sm:$0xff]
        %v2307 = vld [vmem:[#allocation8 + $0xf8] sm:$0xff]
        %v2308 = vld [vmem:[%s12] sm:$0xf]
        %v2310 = vlaneseq
        %v2311 = vshrl.u32 %v2310, 7
        %v2312 = vsub.s32 0, %v2311
        %v2313 = vrot.slane %v2308, %v2312
        %v2314 = vlaneseq
        %v2315 = vshrl.u32 %v2314, 7
        %v2316 = vsub.s32 1, %v2315
        %v2317 = vrot.slane %v2308, %v2316
        %v2318 = vlaneseq
        %v2319 = vshrl.u32 %v2318, 7
        %v2320 = vsub.s32 2, %v2319
        %v2321 = vrot.slane %v2308, %v2320
        %v2322 = vlaneseq
        %v2323 = vshrl.u32 %v2322, 7
        %v2324 = vsub.s32 3, %v2323
        %v2325 = vrot.slane %v2308, %v2324
        %v2362 = vunpack.c.l.b16 %v2276
        %v2363 = vunpack.c.h.b16 %v2276
        %v2364 = vunpack.c.l.b16 %v2277
        %v2365 = vunpack.c.h.b16 %v2277
        %v2366 = vunpack.c.l.b16 %v2278
        %v2367 = vunpack.c.h.b16 %v2278
        %v2368 = vunpack.c.l.b16 %v2279
        %v2369 = vunpack.c.h.b16 %v2279
        %v2370 = vunpack.c.l.b16 %v2280
        %v2371 = vunpack.c.h.b16 %v2280
        %v2372 = vunpack.c.l.b16 %v2281
        %v2373 = vunpack.c.h.b16 %v2281
        %v2374 = vunpack.c.l.b16 %v2282
        %v2375 = vunpack.c.h.b16 %v2282
        %v2376 = vunpack.c.l.b16 %v2283
        %v2377 = vunpack.c.h.b16 %v2283
        %v2378 = vunpack.c.l.b16 %v2284
        %v2379 = vunpack.c.h.b16 %v2284
        %v2380 = vunpack.c.l.b16 %v2285
        %v2381 = vunpack.c.h.b16 %v2285
        %v2382 = vunpack.c.l.b16 %v2286
        %v2383 = vunpack.c.h.b16 %v2286
        %v2384 = vunpack.c.l.b16 %v2287
        %v2385 = vunpack.c.h.b16 %v2287
        %v2386 = vunpack.c.l.b16 %v2288
        %v2387 = vunpack.c.h.b16 %v2288
        %v2388 = vunpack.c.l.b16 %v2289
        %v2389 = vunpack.c.h.b16 %v2289
        %v2390 = vunpack.c.l.b16 %v2290
        %v2391 = vunpack.c.h.b16 %v2290
        %v2392 = vunpack.c.l.b16 %v2291
        %v2393 = vunpack.c.h.b16 %v2291
        %v2394 = vunpack.c.l.b16 %v2292
        %v2395 = vunpack.c.h.b16 %v2292
        %v2396 = vunpack.c.l.b16 %v2293
        %v2397 = vunpack.c.h.b16 %v2293
        %v2398 = vunpack.c.l.b16 %v2294
        %v2399 = vunpack.c.h.b16 %v2294
        %v2400 = vunpack.c.l.b16 %v2295
        %v2401 = vunpack.c.h.b16 %v2295
        %v2402 = vunpack.c.l.b16 %v2296
        %v2403 = vunpack.c.h.b16 %v2296
        %v2404 = vunpack.c.l.b16 %v2297
        %v2405 = vunpack.c.h.b16 %v2297
        %v2406 = vunpack.c.l.b16 %v2298
        %v2407 = vunpack.c.h.b16 %v2298
        %v2408 = vunpack.c.l.b16 %v2299
        %v2409 = vunpack.c.h.b16 %v2299
        %v2410 = vunpack.c.l.b16 %v2300
        %v2411 = vunpack.c.h.b16 %v2300
        %v2412 = vunpack.c.l.b16 %v2301
        %v2413 = vunpack.c.h.b16 %v2301
        %v2414 = vunpack.c.l.b16 %v2302
        %v2415 = vunpack.c.h.b16 %v2302
        %v2416 = vunpack.c.l.b16 %v2303
        %v2417 = vunpack.c.h.b16 %v2303
        %v2418 = vunpack.c.l.b16 %v2304
        %v2419 = vunpack.c.h.b16 %v2304
        %v2420 = vunpack.c.l.b16 %v2305
        %v2421 = vunpack.c.h.b16 %v2305
        %v2422 = vunpack.c.l.b16 %v2306
        %v2423 = vunpack.c.h.b16 %v2306
        %v2424 = vunpack.c.l.b16 %v2307
        %v2425 = vunpack.c.h.b16 %v2307
        %v2426 = vpack.c.b16 %v2366, %v2362
        %v2427 = vpack.c.b16 %v2367, %v2363
        %v2428 = vpack.c.b16 %v2368, %v2364
        %v2429 = vpack.c.b16 %v2369, %v2365
        %v2430 = vpack.c.b16 %v2374, %v2370
        %v2431 = vpack.c.b16 %v2375, %v2371
        %v2432 = vpack.c.b16 %v2376, %v2372
        %v2433 = vpack.c.b16 %v2377, %v2373
        %v2434 = vpack.c.b16 %v2382, %v2378
        %v2435 = vpack.c.b16 %v2383, %v2379
        %v2436 = vpack.c.b16 %v2384, %v2380
        %v2437 = vpack.c.b16 %v2385, %v2381
        %v2438 = vpack.c.b16 %v2390, %v2386
        %v2439 = vpack.c.b16 %v2391, %v2387
        %v2440 = vpack.c.b16 %v2392, %v2388
        %v2441 = vpack.c.b16 %v2393, %v2389
        %v2442 = vpack.c.b16 %v2398, %v2394
        %v2443 = vpack.c.b16 %v2399, %v2395
        %v2444 = vpack.c.b16 %v2400, %v2396
        %v2445 = vpack.c.b16 %v2401, %v2397
        %v2446 = vpack.c.b16 %v2406, %v2402
        %v2447 = vpack.c.b16 %v2407, %v2403
        %v2448 = vpack.c.b16 %v2408, %v2404
        %v2449 = vpack.c.b16 %v2409, %v2405
        %v2450 = vpack.c.b16 %v2414, %v2410
        %v2451 = vpack.c.b16 %v2415, %v2411
        %v2452 = vpack.c.b16 %v2416, %v2412
        %v2453 = vpack.c.b16 %v2417, %v2413
        %v2454 = vpack.c.b16 %v2422, %v2418
        %v2455 = vpack.c.b16 %v2423, %v2419
        %v2456 = vpack.c.b16 %v2424, %v2420
        %v2457 = vpack.c.b16 %v2425, %v2421
        %2490 = vmatprep.subr.bf16.mxu0 %v2427
        %2491 = vmatpush1.bf16.msra.mxu0 %v2426
        %2492 = vmatprep.subr.bf16.mxu0 %v2431
        %2493 = vmatpush1.bf16.msra.mxu0 %v2430
        %2494 = vmatprep.subr.bf16.mxu0 %v2435
        %2495 = vmatpush1.bf16.msra.mxu0 %v2434
        %2496 = vmatprep.subr.bf16.mxu0 %v2439
        %2497 = vmatpush1.bf16.msra.mxu0 %v2438
        %2498 = vmatprep.subr.bf16.mxu0 %v2443
        %2499 = vmatpush1.bf16.msra.mxu0 %v2442
        %2500 = vmatprep.subr.bf16.mxu0 %v2447
        %2501 = vmatpush1.bf16.msra.mxu0 %v2446
        %2502 = vmatprep.subr.bf16.mxu0 %v2451
        %2503 = vmatpush1.bf16.msra.mxu0 %v2450
        %2504 = vmatprep.subr.bf16.mxu0 %v2455
        %2505 = vmatpush1.bf16.msra.mxu0 %v2454
        %2506 = vmatprep.subr.bf16.mxu0 0
        %2507 = vmatpush1.bf16.msra.mxu0 0
        %2508 = vmatprep.subr.bf16.mxu0 0
        %2509 = vmatpush1.bf16.msra.mxu0 0
        %2510 = vmatprep.subr.bf16.mxu0 0
        %2511 = vmatpush1.bf16.msra.mxu0 0
        %2512 = vmatprep.subr.bf16.mxu0 0
        %2513 = vmatpush1.bf16.msra.mxu0 0
        %2514 = vmatprep.subr.bf16.mxu0 0
        %2515 = vmatpush1.bf16.msra.mxu0 0
        %2516 = vmatprep.subr.bf16.mxu0 0
        %2517 = vmatpush1.bf16.msra.mxu0 0
        %2518 = vmatprep.subr.bf16.mxu0 0
        %2519 = vmatpush1.bf16.msra.mxu0 0
        %2520 = vmatprep.subr.bf16.mxu0 0
        %2521 = vmatpush1.bf16.msra.mxu0 0
        %2522 = vmatprep.mubr.bf16.mxu0 0
        %2523 = vmatmul.mubr.bf16.gmra.mrb[0].mxu0 %v2275
        %v2524 = vpop.f32.mrb[0].mxu0
        %v2525 = vadd.f32 %v2313, %v2524
        %v2526 = vpop.f32.mrb[0].mxu0
        %v2527 = vadd.f32 %v2317, %v2526
        %v2528 = vpop.f32.mrb[0].mxu0
        %v2529 = vpop.f32.mrb[0].mxu0
        %2530 = vdwg.mxu0
        %2531 = vmatprep.subr.bf16.mxu0 %v2429
        %2532 = vmatpush1.bf16.msra.mxu0 %v2428
        %2533 = vmatprep.subr.bf16.mxu0 %v2433
        %2534 = vmatpush1.bf16.msra.mxu0 %v2432
        %2535 = vmatprep.subr.bf16.mxu0 %v2437
        %2536 = vmatpush1.bf16.msra.mxu0 %v2436
        %2537 = vmatprep.subr.bf16.mxu0 %v2441
        %2538 = vmatpush1.bf16.msra.mxu0 %v2440
        %2539 = vmatprep.subr.bf16.mxu0 %v2445
        %2540 = vmatpush1.bf16.msra.mxu0 %v2444
        %2541 = vmatprep.subr.bf16.mxu0 %v2449
        %2542 = vmatpush1.bf16.msra.mxu0 %v2448
        %2543 = vmatprep.subr.bf16.mxu0 %v2453
        %2544 = vmatpush1.bf16.msra.mxu0 %v2452
        %2545 = vmatprep.subr.bf16.mxu0 %v2457
        %2546 = vmatpush1.bf16.msra.mxu0 %v2456
        %2547 = vmatprep.subr.bf16.mxu0 0
        %2548 = vmatpush1.bf16.msra.mxu0 0
        %2549 = vmatprep.subr.bf16.mxu0 0
        %2550 = vmatpush1.bf16.msra.mxu0 0
        %2551 = vmatprep.subr.bf16.mxu0 0
        %2552 = vmatpush1.bf16.msra.mxu0 0
        %2553 = vmatprep.subr.bf16.mxu0 0
        %2554 = vmatpush1.bf16.msra.mxu0 0
        %2555 = vmatprep.subr.bf16.mxu0 0
        %2556 = vmatpush1.bf16.msra.mxu0 0
        %2557 = vmatprep.subr.bf16.mxu0 0
        %2558 = vmatpush1.bf16.msra.mxu0 0
        %2559 = vmatprep.subr.bf16.mxu0 0
        %2560 = vmatpush1.bf16.msra.mxu0 0
        %2561 = vmatprep.subr.bf16.mxu0 0
        %2562 = vmatpush1.bf16.msra.mxu0 0
        %2563 = vmatprep.mubr.bf16.mxu0 0
        %2564 = vmatmul.mubr.bf16.gmra.mrb[0].mxu0 %v2275
        %v2565 = vpop.f32.mrb[0].mxu0
        %v2566 = vadd.f32 %v2321, %v2565
        %v2567 = vpop.f32.mrb[0].mxu0
        %v2568 = vadd.f32 %v2325, %v2567
        %v2569 = vpop.f32.mrb[0].mxu0
        %v2570 = vpop.f32.mrb[0].mxu0
        %2571 = vdwg.mxu0
        %v2572 = vmax.f32 %v2525, 0.0
        %v2573 = vmax.f32 %v2527, 0.0
        %v2574 = vmax.f32 %v2566, 0.0
        %v2575 = vmax.f32 %v2568, 0.0
        %v2576 = vpack.c.bf16 %v2572, %v2572
        %v2577 = vpack.c.bf16 %v2573, %v2573
        %v2578 = vpack.c.bf16 %v2574, %v2574
        %v2579 = vpack.c.bf16 %v2575, %v2575
        %v2580 = vld [vmem:[#allocation10] sm:$0xf]
        %v2581 = vld [vmem:[#allocation10 + $0x4] sm:$0xf]
        %v2582 = vld [vmem:[#allocation10 + $0x8] sm:$0xf]
        %v2583 = vld [vmem:[#allocation10 + $0xc] sm:$0xf]
        %v2584 = vld [vmem:[#allocation10 + $0x10] sm:$0xf]
        %v2585 = vld [vmem:[#allocation10 + $0x14] sm:$0xf]
        %v2586 = vld [vmem:[#allocation10 + $0x18] sm:$0xf]
        %v2587 = vld [vmem:[#allocation10 + $0x1c] sm:$0xf]
        %v2588 = vld [vmem:[#allocation10 + $0x20] sm:$0xf]
        %v2589 = vld [vmem:[#allocation10 + $0x24] sm:$0xf]
        %v2590 = vld [vmem:[#allocation10 + $0x28] sm:$0xf]
        %v2591 = vld [vmem:[#allocation10 + $0x2c] sm:$0xf]
        %v2592 = vld [vmem:[#allocation10 + $0x30] sm:$0xf]
        %v2593 = vld [vmem:[#allocation10 + $0x34] sm:$0xf]
        %v2594 = vld [vmem:[#allocation10 + $0x38] sm:$0xf]
        %v2595 = vld [vmem:[#allocation10 + $0x3c] sm:$0xf]
        %v2596 = vld [vmem:[#allocation10 + $0x40] sm:$0xf]
        %v2597 = vld [vmem:[#allocation10 + $0x44] sm:$0xf]
        %v2598 = vld [vmem:[#allocation10 + $0x48] sm:$0xf]
        %v2599 = vld [vmem:[#allocation10 + $0x4c] sm:$0xf]
        %v2600 = vld [vmem:[#allocation10 + $0x50] sm:$0xf]
        %v2601 = vld [vmem:[#allocation10 + $0x54] sm:$0xf]
        %v2602 = vld [vmem:[#allocation10 + $0x58] sm:$0xf]
        %v2603 = vld [vmem:[#allocation10 + $0x5c] sm:$0xf]
        %v2604 = vld [vmem:[#allocation10 + $0x60] sm:$0xf]
        %v2605 = vld [vmem:[#allocation10 + $0x64] sm:$0xf]
        %v2606 = vld [vmem:[#allocation10 + $0x68] sm:$0xf]
        %v2607 = vld [vmem:[#allocation10 + $0x6c] sm:$0xf]
        %v2608 = vld [vmem:[#allocation10 + $0x70] sm:$0xf]
        %v2609 = vld [vmem:[#allocation10 + $0x74] sm:$0xf]
        %v2610 = vld [vmem:[#allocation10 + $0x78] sm:$0xf]
        %v2611 = vld [vmem:[#allocation10 + $0x7c] sm:$0xf]
        %v2612 = vld [vmem:[#allocation10 + $0x80] sm:$0xf]
        %v2613 = vld [vmem:[#allocation10 + $0x84] sm:$0xf]
        %v2614 = vld [vmem:[#allocation10 + $0x88] sm:$0xf]
        %v2615 = vld [vmem:[#allocation10 + $0x8c] sm:$0xf]
        %v2616 = vld [vmem:[#allocation10 + $0x90] sm:$0xf]
        %v2617 = vld [vmem:[#allocation10 + $0x94] sm:$0xf]
        %v2618 = vld [vmem:[#allocation10 + $0x98] sm:$0xf]
        %v2619 = vld [vmem:[#allocation10 + $0x9c] sm:$0xf]
        %v2620 = vld [vmem:[#allocation10 + $0xa0] sm:$0xf]
        %v2621 = vld [vmem:[#allocation10 + $0xa4] sm:$0xf]
        %v2622 = vld [vmem:[#allocation10 + $0xa8] sm:$0xf]
        %v2623 = vld [vmem:[#allocation10 + $0xac] sm:$0xf]
        %v2624 = vld [vmem:[#allocation10 + $0xb0] sm:$0xf]
        %v2625 = vld [vmem:[#allocation10 + $0xb4] sm:$0xf]
        %v2626 = vld [vmem:[#allocation10 + $0xb8] sm:$0xf]
        %v2627 = vld [vmem:[#allocation10 + $0xbc] sm:$0xf]
        %v2628 = vld [vmem:[#allocation10 + $0xc0] sm:$0xf]
        %v2629 = vld [vmem:[#allocation10 + $0xc4] sm:$0xf]
        %v2630 = vld [vmem:[#allocation10 + $0xc8] sm:$0xf]
        %v2631 = vld [vmem:[#allocation10 + $0xcc] sm:$0xf]
        %v2632 = vld [vmem:[#allocation10 + $0xd0] sm:$0xf]
        %v2633 = vld [vmem:[#allocation10 + $0xd4] sm:$0xf]
        %v2634 = vld [vmem:[#allocation10 + $0xd8] sm:$0xf]
        %v2635 = vld [vmem:[#allocation10 + $0xdc] sm:$0xf]
        %v2636 = vld [vmem:[#allocation10 + $0xe0] sm:$0xf]
        %v2637 = vld [vmem:[#allocation10 + $0xe4] sm:$0xf]
        %v2638 = vld [vmem:[#allocation10 + $0xe8] sm:$0xf]
        %v2639 = vld [vmem:[#allocation10 + $0xec] sm:$0xf]
        %v2640 = vld [vmem:[#allocation10 + $0xf0] sm:$0xf]
        %v2641 = vld [vmem:[#allocation10 + $0xf4] sm:$0xf]
        %v2642 = vld [vmem:[#allocation10 + $0xf8] sm:$0xf]
        %v2643 = vld [vmem:[#allocation10 + $0xfc] sm:$0xf]
        %v2644 = vld [vmem:[%s14] sm:$0x1]
        %v2646 = vlaneseq
        %v2647 = vshrl.u32 %v2646, 7
        %v2648 = vsub.s32 0, %v2647
        %v2649 = vrot.slane %v2644, %v2648
        %v2715 = vunpack.c.l.b16 %v2580
        %v2716 = vunpack.c.l.b16 %v2581
        %v2717 = vunpack.c.l.b16 %v2582
        %v2718 = vunpack.c.l.b16 %v2583
        %v2719 = vunpack.c.l.b16 %v2584
        %v2720 = vunpack.c.l.b16 %v2585
        %v2721 = vunpack.c.l.b16 %v2586
        %v2722 = vunpack.c.l.b16 %v2587
        %v2723 = vunpack.c.l.b16 %v2588
        %v2724 = vunpack.c.l.b16 %v2589
        %v2725 = vunpack.c.l.b16 %v2590
        %v2726 = vunpack.c.l.b16 %v2591
        %v2727 = vunpack.c.l.b16 %v2592
        %v2728 = vunpack.c.l.b16 %v2593
        %v2729 = vunpack.c.l.b16 %v2594
        %v2730 = vunpack.c.l.b16 %v2595
        %v2731 = vunpack.c.l.b16 %v2596
        %v2732 = vunpack.c.l.b16 %v2597
        %v2733 = vunpack.c.l.b16 %v2598
        %v2734 = vunpack.c.l.b16 %v2599
        %v2735 = vunpack.c.l.b16 %v2600
        %v2736 = vunpack.c.l.b16 %v2601
        %v2737 = vunpack.c.l.b16 %v2602
        %v2738 = vunpack.c.l.b16 %v2603
        %v2739 = vunpack.c.l.b16 %v2604
        %v2740 = vunpack.c.l.b16 %v2605
        %v2741 = vunpack.c.l.b16 %v2606
        %v2742 = vunpack.c.l.b16 %v2607
        %v2743 = vunpack.c.l.b16 %v2608
        %v2744 = vunpack.c.l.b16 %v2609
        %v2745 = vunpack.c.l.b16 %v2610
        %v2746 = vunpack.c.l.b16 %v2611
        %v2747 = vunpack.c.l.b16 %v2612
        %v2748 = vunpack.c.l.b16 %v2613
        %v2749 = vunpack.c.l.b16 %v2614
        %v2750 = vunpack.c.l.b16 %v2615
        %v2751 = vunpack.c.l.b16 %v2616
        %v2752 = vunpack.c.l.b16 %v2617
        %v2753 = vunpack.c.l.b16 %v2618
        %v2754 = vunpack.c.l.b16 %v2619
        %v2755 = vunpack.c.l.b16 %v2620
        %v2756 = vunpack.c.l.b16 %v2621
        %v2757 = vunpack.c.l.b16 %v2622
        %v2758 = vunpack.c.l.b16 %v2623
        %v2759 = vunpack.c.l.b16 %v2624
        %v2760 = vunpack.c.l.b16 %v2625
        %v2761 = vunpack.c.l.b16 %v2626
        %v2762 = vunpack.c.l.b16 %v2627
        %v2763 = vunpack.c.l.b16 %v2628
        %v2764 = vunpack.c.l.b16 %v2629
        %v2765 = vunpack.c.l.b16 %v2630
        %v2766 = vunpack.c.l.b16 %v2631
        %v2767 = vunpack.c.l.b16 %v2632
        %v2768 = vunpack.c.l.b16 %v2633
        %v2769 = vunpack.c.l.b16 %v2634
        %v2770 = vunpack.c.l.b16 %v2635
        %v2771 = vunpack.c.l.b16 %v2636
        %v2772 = vunpack.c.l.b16 %v2637
        %v2773 = vunpack.c.l.b16 %v2638
        %v2774 = vunpack.c.l.b16 %v2639
        %v2775 = vunpack.c.l.b16 %v2640
        %v2776 = vunpack.c.l.b16 %v2641
        %v2777 = vunpack.c.l.b16 %v2642
        %v2778 = vunpack.c.l.b16 %v2643
        %v2779 = vpack.c.b16 %v2716, %v2715
        %v2780 = vpack.c.b16 %v2718, %v2717
        %v2781 = vpack.c.b16 %v2720, %v2719
        %v2782 = vpack.c.b16 %v2722, %v2721
        %v2783 = vpack.c.b16 %v2724, %v2723
        %v2784 = vpack.c.b16 %v2726, %v2725
        %v2785 = vpack.c.b16 %v2728, %v2727
        %v2786 = vpack.c.b16 %v2730, %v2729
        %v2787 = vpack.c.b16 %v2732, %v2731
        %v2788 = vpack.c.b16 %v2734, %v2733
        %v2789 = vpack.c.b16 %v2736, %v2735
        %v2790 = vpack.c.b16 %v2738, %v2737
        %v2791 = vpack.c.b16 %v2740, %v2739
        %v2792 = vpack.c.b16 %v2742, %v2741
        %v2793 = vpack.c.b16 %v2744, %v2743
        %v2794 = vpack.c.b16 %v2746, %v2745
        %v2795 = vpack.c.b16 %v2748, %v2747
        %v2796 = vpack.c.b16 %v2750, %v2749
        %v2797 = vpack.c.b16 %v2752, %v2751
        %v2798 = vpack.c.b16 %v2754, %v2753
        %v2799 = vpack.c.b16 %v2756, %v2755
        %v2800 = vpack.c.b16 %v2758, %v2757
        %v2801 = vpack.c.b16 %v2760, %v2759
        %v2802 = vpack.c.b16 %v2762, %v2761
        %v2803 = vpack.c.b16 %v2764, %v2763
        %v2804 = vpack.c.b16 %v2766, %v2765
        %v2805 = vpack.c.b16 %v2768, %v2767
        %v2806 = vpack.c.b16 %v2770, %v2769
        %v2807 = vpack.c.b16 %v2772, %v2771
        %v2808 = vpack.c.b16 %v2774, %v2773
        %v2809 = vpack.c.b16 %v2776, %v2775
        %v2810 = vpack.c.b16 %v2778, %v2777
        %2843 = vmatprep.subr.bf16.mxu0 0
        %2844 = vmatpush1.bf16.msra.mxu0 %v2779
        %2845 = vmatprep.subr.bf16.mxu0 0
        %2846 = vmatpush1.bf16.msra.mxu0 %v2780
        %2847 = vmatprep.subr.bf16.mxu0 0
        %2848 = vmatpush1.bf16.msra.mxu0 %v2781
        %2849 = vmatprep.subr.bf16.mxu0 0
        %2850 = vmatpush1.bf16.msra.mxu0 %v2782
        %2851 = vmatprep.subr.bf16.mxu0 0
        %2852 = vmatpush1.bf16.msra.mxu0 %v2783
        %2853 = vmatprep.subr.bf16.mxu0 0
        %2854 = vmatpush1.bf16.msra.mxu0 %v2784
        %2855 = vmatprep.subr.bf16.mxu0 0
        %2856 = vmatpush1.bf16.msra.mxu0 %v2785
        %2857 = vmatprep.subr.bf16.mxu0 0
        %2858 = vmatpush1.bf16.msra.mxu0 %v2786
        %2859 = vmatprep.subr.bf16.mxu0 0
        %2860 = vmatpush1.bf16.msra.mxu0 %v2787
        %2861 = vmatprep.subr.bf16.mxu0 0
        %2862 = vmatpush1.bf16.msra.mxu0 %v2788
        %2863 = vmatprep.subr.bf16.mxu0 0
        %2864 = vmatpush1.bf16.msra.mxu0 %v2789
        %2865 = vmatprep.subr.bf16.mxu0 0
        %2866 = vmatpush1.bf16.msra.mxu0 %v2790
        %2867 = vmatprep.subr.bf16.mxu0 0
        %2868 = vmatpush1.bf16.msra.mxu0 %v2791
        %2869 = vmatprep.subr.bf16.mxu0 0
        %2870 = vmatpush1.bf16.msra.mxu0 %v2792
        %2871 = vmatprep.subr.bf16.mxu0 0
        %2872 = vmatpush1.bf16.msra.mxu0 %v2793
        %2873 = vmatprep.subr.bf16.mxu0 0
        %2874 = vmatpush1.bf16.msra.mxu0 %v2794
        %2875 = vmatprep.mubr.bf16.mxu0 %v2577
        %2876 = vmatmul.mubr.bf16.gmra.mrb[0].mxu0 %v2576
        %v2877 = vpop.f32.mrb[0].mxu0
        %v2878 = vadd.f32 %v2649, %v2877
        %v2879 = vpop.f32.mrb[0].mxu0
        %v2880 = vpop.f32.mrb[0].mxu0
        %v2881 = vpop.f32.mrb[0].mxu0
        %2882 = vdwg.mxu0
        %2883 = vmatprep.subr.bf16.mxu0 0
        %2884 = vmatpush1.bf16.msra.mxu0 %v2795
        %2885 = vmatprep.subr.bf16.mxu0 0
        %2886 = vmatpush1.bf16.msra.mxu0 %v2796
        %2887 = vmatprep.subr.bf16.mxu0 0
        %2888 = vmatpush1.bf16.msra.mxu0 %v2797
        %2889 = vmatprep.subr.bf16.mxu0 0
        %2890 = vmatpush1.bf16.msra.mxu0 %v2798
        %2891 = vmatprep.subr.bf16.mxu0 0
        %2892 = vmatpush1.bf16.msra.mxu0 %v2799
        %2893 = vmatprep.subr.bf16.mxu0 0
        %2894 = vmatpush1.bf16.msra.mxu0 %v2800
        %2895 = vmatprep.subr.bf16.mxu0 0
        %2896 = vmatpush1.bf16.msra.mxu0 %v2801
        %2897 = vmatprep.subr.bf16.mxu0 0
        %2898 = vmatpush1.bf16.msra.mxu0 %v2802
        %2899 = vmatprep.subr.bf16.mxu0 0
        %2900 = vmatpush1.bf16.msra.mxu0 %v2803
        %2901 = vmatprep.subr.bf16.mxu0 0
        %2902 = vmatpush1.bf16.msra.mxu0 %v2804
        %2903 = vmatprep.subr.bf16.mxu0 0
        %2904 = vmatpush1.bf16.msra.mxu0 %v2805
        %2905 = vmatprep.subr.bf16.mxu0 0
        %2906 = vmatpush1.bf16.msra.mxu0 %v2806
        %2907 = vmatprep.subr.bf16.mxu0 0
        %2908 = vmatpush1.bf16.msra.mxu0 %v2807
        %2909 = vmatprep.subr.bf16.mxu0 0
        %2910 = vmatpush1.bf16.msra.mxu0 %v2808
        %2911 = vmatprep.subr.bf16.mxu0 0
        %2912 = vmatpush1.bf16.msra.mxu0 %v2809
        %2913 = vmatprep.subr.bf16.mxu0 0
        %2914 = vmatpush1.bf16.msra.mxu0 %v2810
        %2915 = vmatprep.mubr.bf16.mxu0 %v2579
        %2916 = vmatmul.mubr.bf16.gmra.mrb[0].mxu0 %v2578
        %v2917 = vpop.f32.mrb[0].mxu0
        %v2918 = vadd.f32 %v2878, %v2917
        %v2919 = vpop.f32.mrb[0].mxu0
        %v2920 = vpop.f32.mrb[0].mxu0
        %v2921 = vpop.f32.mrb[0].mxu0
        %2922 = vdwg.mxu0
        %v2923 = vadd.f32 %v2918, %v2274
        %v2924 = vld [vmem:[%s15] sm:$0x1]
        %v2925 = vld [vmem:[#allocation11] sm:$0x1]
        %2926 = vadd.xlane.f32.xlu0 %v2923
        %v2927 = vpop.xlane.xlu0 %2926
        %v2928 = vmul.f32 %v2927, %v2251
        %v2929 = vsub.f32 %v2923, %v2928
        %v2930 = vmul.f32 %v2929, %v2929
        %2931 = vadd.xlane.f32.xlu0 %v2930
        %v2932 = vpop.xlane.xlu0 %2931
        %v2933 = vmul.f32 %v2932, %v2251
        %v2934 = vadd.f32 %v2933, 1e-05
        %v2935 = vrsqrt.pop %v2934
        %v2936 = vmul.f32 %v2929, %v2935
        %v2938 = vlaneseq
        %v2939 = vshrl.u32 %v2938, 7
        %v2940 = vsub.s32 0, %v2939
        %v2941 = vrot.slane %v2924, %v2940
        %v2943 = vmul.f32 %v2936, %v2941
        %v2945 = vlaneseq
        %v2946 = vshrl.u32 %v2945, 7
        %v2947 = vsub.s32 0, %v2946
        %v2948 = vrot.slane %v2925, %v2947
        %v2950 = vadd.f32 %v2943, %v2948
        %2951 = vst [vmem:[%s684] sm:$0xff] %v2950
        %s2952 = sand.u32 %s436, 1
        %s2953 = scalar_lea.sflag [#allocation4], %s2952
        %s2954 = sand.u32 %s436, 1
        %s2955 = smul.addr %s2954, 8
        %s2956 = scalar_lea.vmem [#allocation13], %s2955
        // Predicated region
        $region113: #{transformer_block_forward.1} parent=87 // pred_check
          %p2957 = pneg %p446
        $region114: #{transformer_block_forward.1} parent=87 // pred_check_branch
          %2959 = sbr.rel (%p2957) target = $region116
        $region115: #{transformer_block_forward.1} parent=87 // pred_region
          %s2961 = ssub.s32 128, 128
          %2962 = vsyncadd %s2953, %s2961
          %s2963 = sadd.s32 %s40, %s39
          %s2964 = smul.addr %s2963, 128
          %s2965 = scalar_lea.hbm %s17, %s2964
          %s2967 = sshll.u32 %s2956, 4
          %s2968 = int_to_ptr.vmem [resolvable:$true] %s2967
          %2970 = dma.vmem_to_hbm [thread:$0]  %s2968, 128, %s2965, %s2953
        $region116: #{transformer_block_forward.1} parent=87 // pred_fallthru
          _
      $region88: #{transformer_block_forward.1} parent=5 // pred_fallthru
        _
      %p2971 = scmp.le.s32.totalorder 2, %s30
      // Predicated region
      $region117: #{transformer_block_forward.1} parent=5 // pred_check
        %p2972 = pneg %p2971
      $region118: #{transformer_block_forward.1} parent=5 // pred_check_branch
        %2974 = sbr.rel (%p2972) target = $region120
      $region119: #{transformer_block_forward.1} parent=5 // pred_region
        %s2975 = ssub.s32 %s30, 2
        // Predicated region
        $region121: #{transformer_block_forward.1} parent=119 // pred_check
          %p2976 = pneg %p452
        $region122: #{transformer_block_forward.1} parent=119 // pred_check_branch
          %2978 = sbr.rel (%p2976) target = $region124
        $region123: #{transformer_block_forward.1} parent=119 // pred_region
          %s2979 = sand.u32 %s437, 1
          %s2980 = scalar_lea.sflag [#allocation4], %s2979
          %s2981 = sand.u32 %s437, 1
          %s2982 = smul.addr %s2981, 8
          %s2983 = scalar_lea.vmem [#allocation13], %s2982
          %2984 = dma.done %s2980, 128
        $region124: #{transformer_block_forward.1} parent=119 // pred_fallthru
          _
      $region120: #{transformer_block_forward.1} parent=5 // pred_fallthru
        _
    $region6: #{transformer_block_forward.1} parent=1 // loop_footer
      %s34 = sadd.s32 1, %s30
    $region7: #{transformer_block_forward.1} parent=1 // loop_footer_branch
      %29 = sbr.rel target = $region3
    $region8: #{transformer_block_forward.1} parent=1 // loop_exit
      _
    %2985 = vsyncpa [#allocation3], 1
    %s2986 = scalar_lea.sflag [#allocation3], 1
    %2987 = vsyncpa %s2986, 1
    %2988 = vsyncpa [#allocation6], 1
    %2989 = vsyncpa [#allocation9], 1
    %2990 = vsyncpa [#allocation12], 1
    %2991 = vsyncpa [#allocation4], 1
    %s2992 = scalar_lea.sflag [#allocation4], 1
    %2993 = vsyncpa %s2992, 1

</llo_original>
